<compile_context>
chip_gen: v6e
topology: v6e:2x2x1
jax: 0.10.0
libtpu: 0.0.40
codegen_flags: <defaults>
</compile_context>

<pallas_src>
import numpy as np
import jax
import jax.numpy as jnp
from jax.experimental import pallas as pl
from jax.experimental.pallas import tpu as pltpu

H = 128  # padded hidden lane width


def _round_up(a, b):
    return ((a + b - 1) // b) * b


# --------------------------- Pallas kernel ---------------------------

def sdf_decoder_kernel(x_ref,
                       w0_ref, b0_ref,      # fused lin0 + skip: (D0, 256), (1, 256)
                       w1_ref, b1_ref,      # (128, 64), (1, 64)
                       w2_ref, b2_ref,      # (64, out2), (1, out2)
                       w3_ref, b3_ref,      # (out2, 128), (1, 128)
                       w4_ref, b4_ref,      # (1, 128) f32 row, (1, 1) f32
                       o_ref):
    x = x_ref[...]                        # weight dtype (bf16 by default)

    # Fused layer 0: one matmul with 256 output lanes = [lin0 | x @ w3b skip]; f32 acc.
    h01 = jnp.dot(x, w0_ref[...], preferred_element_type=jnp.float32) + b0_ref[...]
    # ReLU in f32, then cast ONCE to the MXU operand dtype for the next dot.
    h = jnp.maximum(h01[:, :H], 0.0).astype(w1_ref.dtype)   # (T, 128)
    skip = h01[:, H:]                                        # (T, 128) f32, kept f32

    # lin1 + ReLU (padded K=128; pad rows of w1 are zero)
    h = jnp.maximum(jnp.dot(h, w1_ref[...], preferred_element_type=jnp.float32)
                    + b1_ref[...], 0.0).astype(w2_ref.dtype)
    # lin2 + ReLU
    h = jnp.maximum(jnp.dot(h, w2_ref[...], preferred_element_type=jnp.float32)
                    + b2_ref[...], 0.0).astype(w3_ref.dtype)
    # lin3 (+ latent_in skip) + ReLU — output padded to 128 lanes, kept f32 (VPU consumer)
    h = jnp.maximum(jnp.dot(h, w3_ref[...], preferred_element_type=jnp.float32)
                    + skip + b3_ref[...], 0.0)
    # lin4 -> scalar SDF on the VPU/XLU instead of the MXU: broadcast-mul by the f32 w4
    # row then a lane reduction (the K=128 -> N=1 matmul would waste 255/256 MXU lanes).
    sdf = jnp.sum(h * w4_ref[...], axis=-1, keepdims=True) + b4_ref[...]
    o_ref[...] = jnp.tanh(sdf)


def _const_spec(shape):
    nd = len(shape)
    return pl.BlockSpec(shape, lambda i, _nd=nd: (0,) * _nd)


def sdf_decoder_pallas(x, kparams, *, tile_n=2048):
    """x: [N, latent_dim+3]. kparams: tuple from pack_kernel_params()."""
    N, D = x.shape
    w_dtype = kparams[0].dtype
    itemsize = jnp.dtype(w_dtype).itemsize
    x = x.astype(w_dtype)                 # halves input DMA + VMEM in the bf16 default

    # Tile: cap at 2048 (per-step overhead already <1%; keeps VMEM well under v7x 64 MiB),
    # shrink for small N so there are >=2 grid steps, then force an EVEN step count so the
    # "parallel" batch axis balances across v7x's two TensorCores.
    tile_n = max(128, min(_round_up(tile_n, 128), 2048))
    tile = max(128, min(tile_n, _round_up(pl.cdiv(N, 2), 128)))
    grid_steps = pl.cdiv(N, tile)
    if grid_steps > 1 and grid_steps % 2 == 1:
        grid_steps += 1
    n_pad = grid_steps * tile
    if n_pad != N:
        x = jnp.pad(x, ((0, n_pad - N), (0, 0)))
    grid = (grid_steps,)

    in_specs = [pl.BlockSpec((tile, D), lambda i: (i, 0))]
    for p in kparams:
        in_specs.append(_const_spec(p.shape))
    out_spec = pl.BlockSpec((tile, 1), lambda i: (i, 0))

    # VMEM budget from the real per-tile footprint (no silent clamp games; tile<=2048 keeps
    # this ~20 MiB): double-buffered x/out blocks + weights + activation slabs.
    lane = 128
    blk_in = tile * _round_up(D, lane) * itemsize
    blk_out = tile * lane * 4
    acts = tile * lane * (2 * 4            # h01 (256 lanes, f32)
                          + 4              # skip (f32)
                          + 4              # lin3 output (f32)
                          + 3 * itemsize   # bf16/f32 hidden slabs
                          + 4)             # temporaries
    w_bytes = sum(int(p.size) * p.dtype.itemsize for p in kparams)
    vmem_limit = 2 * blk_in + 2 * blk_out + acts + 4 * w_bytes + (4 << 20)
    vmem_limit = int(min(max(vmem_limit, 24 << 20), 48 << 20))  # < v7x 64 MiB physical

    # Advisory cost estimate for XLA's scheduler (MXU matmuls + VPU final layer + tanh).
    mxu_flops = 2 * n_pad * sum(int(kparams[i].shape[0]) * int(kparams[i].shape[1])
                                for i in (0, 2, 4, 6))
    vpu_flops = 2 * n_pad * int(kparams[8].shape[1])
    cost = pl.CostEstimate(
        flops=int(mxu_flops + vpu_flops),
        transcendentals=int(n_pad),
        bytes_accessed=int(n_pad * (D * itemsize + 4) + w_bytes))

    out = pl.pallas_call(
        sdf_decoder_kernel,
        out_shape=jax.ShapeDtypeStruct((n_pad, 1), jnp.float32),
        grid_spec=pltpu.PrefetchScalarGridSpec(
            num_scalar_prefetch=0,
            grid=grid,
            in_specs=in_specs,
            out_specs=out_spec,
        ),
        compiler_params=pltpu.CompilerParams(
            dimension_semantics=("parallel",),
            vmem_limit_bytes=vmem_limit),
        cost_estimate=cost,
    )(x, *kparams)
    return out[:N]


# ---------------- parameter construction (glue, plain JAX) ----------------

def weight_norm_linear(key, in_dim, out_dim):
    """(W_eff [in,out], b [1,out]) with W_eff = g * V / ||V|| (norm per output unit)."""
    kv, kg, kb = jax.random.split(key, 3)
    v = jax.random.normal(kv, (in_dim, out_dim), jnp.float32) * 0.1
    g = jax.random.uniform(kg, (1, out_dim), jnp.float32, 0.5, 1.5)
    norm = jnp.sqrt(jnp.sum(v * v, axis=0, keepdims=True))
    w_eff = g * v / norm
    b = jax.random.normal(kb, (1, out_dim), jnp.float32) * 0.01
    return w_eff, b


def make_logical_params(key, latent_dim, dims=(64, 64, 128, 64)):
    D0 = latent_dim + 3                       # dims[0]
    full = [D0] + list(dims) + [1]            # [D0, 64, 64, 128, 64, 1]
    out2 = full[3] - D0                       # lin2 output (layer 3 is in latent_in)
    keys = jax.random.split(key, 5)
    w0, b0 = weight_norm_linear(keys[0], full[0], full[1])   # D0 -> 64
    w1, b1 = weight_norm_linear(keys[1], full[1], full[2])   # 64 -> 64
    w2, b2 = weight_norm_linear(keys[2], full[2], out2)      # 64 -> 128 - D0
    w3, b3 = weight_norm_linear(keys[3], full[3], full[4])   # 128 -> 64 (input = cat(h, x))
    w4, b4 = weight_norm_linear(keys[4], full[4], full[5])   # 64 -> 1
    return dict(w0=w0, b0=b0, w1=w1, b1=b1, w2=w2, b2=b2, w3=w3, b3=b3,
                w4=w4, b4=b4, D0=D0, out2=out2)


def pack_kernel_params(lp, weight_dtype=jnp.bfloat16):
    """Fused / lane-padded parameter set. bf16 MXU operands by default (f32 accumulation);
    biases and the VPU-side w4 row stay f32."""
    D0, out2 = lp["D0"], lp["out2"]
    h1 = lp["w0"].shape[1]                      # 64
    w3a, w3b = lp["w3"][:out2], lp["w3"][out2:]  # (out2, 64), (D0, 64)

    # Fused layer 0: [ w0 | 0 | w3b | 0 ] -> (D0, 256); bias only on the lin0 half.
    w0cat = jnp.zeros((D0, 2 * H), jnp.float32)
    w0cat = w0cat.at[:, :h1].set(lp["w0"])
    w0cat = w0cat.at[:, H:H + h1].set(w3b)
    b0cat = jnp.zeros((1, 2 * H), jnp.float32).at[:, :h1].set(lp["b0"])

    # lin1: K padded 64 -> 128 (pad rows zero so the padded lanes of h0 contribute nothing).
    w1p = jnp.zeros((H, lp["w1"].shape[1]), jnp.float32).at[:h1].set(lp["w1"])
    # lin3a: output padded 64 -> 128 lanes so the full 128-wide skip slab can be added.
    w3ap = jnp.zeros((out2, H), jnp.float32).at[:, :h1].set(w3a)
    b3p = jnp.zeros((1, H), jnp.float32).at[:, :h1].set(lp["b3"])
    # lin4 as a VPU row: (1, 128) f32 with zero pad lanes (kept f32 for SDF accuracy).
    w4row = jnp.zeros((1, H), jnp.float32).at[0, :h1].set(lp["w4"][:, 0])

    wd = weight_dtype
    return (w0cat.astype(wd), b0cat,
            w1p.astype(wd), lp["b1"],
            lp["w2"].astype(wd), lp["b2"],
            w3ap.astype(wd), b3p,
            w4row, lp["b4"])


# --------------------------- pure-JAX reference ---------------------------

def sdf_decoder_ref(x, lp):
    h = jnp.maximum(x @ lp["w0"] + lp["b0"], 0.0)
    h = jnp.maximum(h @ lp["w1"] + lp["b1"], 0.0)
    h = jnp.maximum(h @ lp["w2"] + lp["b2"], 0.0)
    h = jnp.maximum(jnp.concatenate([h, x], axis=1) @ lp["w3"] + lp["b3"], 0.0)
    return jnp.tanh(h @ lp["w4"] + lp["b4"])


if __name__ == "__main__":
    latent_dim = 32
    N = 300                                    # not tile-aligned: exercises cdiv + padding
    key = jax.random.PRNGKey(0)
    kx, kp = jax.random.split(key)

    x = jax.random.normal(kx, (N, latent_dim + 3), jnp.float32)   # [latent || xyz]
    lp = make_logical_params(kp, latent_dim)
    ref = jax.block_until_ready(sdf_decoder_ref(x, lp))

    # f32 path: structural correctness check, exact (up to summation order) vs reference.
    kparams_f32 = pack_kernel_params(lp, weight_dtype=jnp.float32)
    out_f32 = jax.block_until_ready(sdf_decoder_pallas(x, kparams_f32))
    np.testing.assert_allclose(np.asarray(out_f32), np.asarray(ref), rtol=1e-5, atol=1e-5)

    # Default bf16 path (MXU-native on v6e/v7x, fewer passes on v5e); f32 accumulation,
    # loose tolerance for the quantized operands.
    kparams_bf16 = pack_kernel_params(lp)
    out_bf16 = jax.block_until_ready(sdf_decoder_pallas(x, kparams_bf16))
    np.testing.assert_allclose(np.asarray(out_bf16), np.asarray(ref), rtol=0.0, atol=1e-1)

    print("KERNEL_OK")
</pallas_src>

<mosaic_0001>
module attributes {stable_mosaic.version = 11 : i64} {
  func.func @sdf_decoder_kernel(%arg0: i32, %arg1: memref<256x35xf32, #tpu.memory_space<vmem>>, %arg2: memref<35x256xf32, #tpu.memory_space<vmem>>, %arg3: memref<1x256xf32, #tpu.memory_space<vmem>>, %arg4: memref<128x64xf32, #tpu.memory_space<vmem>>, %arg5: memref<1x64xf32, #tpu.memory_space<vmem>>, %arg6: memref<64x93xf32, #tpu.memory_space<vmem>>, %arg7: memref<1x93xf32, #tpu.memory_space<vmem>>, %arg8: memref<93x128xf32, #tpu.memory_space<vmem>>, %arg9: memref<1x128xf32, #tpu.memory_space<vmem>>, %arg10: memref<1x128xf32, #tpu.memory_space<vmem>>, %arg11: memref<1x1xf32, #tpu.memory_space<vmem>>, %arg12: memref<256x1xf32, #tpu.memory_space<vmem>>) attributes {dimension_semantics = [#tpu.dimension_semantics<parallel>], iteration_bounds = array<i64: 2>, scalar_prefetch = 0 : i64, scratch_operands = 0 : i64, tpu.core_type = #tpu.core_type<tc>, window_params = [{transform_indices = @transform_0, window_bounds = array<i64: 256, 35>}, {pipeline_mode = #tpu.pipeline_mode<synchronous>, transform_indices = @transform_1, window_bounds = array<i64: 35, 256>}, {pipeline_mode = #tpu.pipeline_mode<synchronous>, transform_indices = @transform_2, window_bounds = array<i64: 1, 256>}, {pipeline_mode = #tpu.pipeline_mode<synchronous>, transform_indices = @transform_3, window_bounds = array<i64: 128, 64>}, {pipeline_mode = #tpu.pipeline_mode<synchronous>, transform_indices = @transform_4, window_bounds = array<i64: 1, 64>}, {pipeline_mode = #tpu.pipeline_mode<synchronous>, transform_indices = @transform_5, window_bounds = array<i64: 64, 93>}, {pipeline_mode = #tpu.pipeline_mode<synchronous>, transform_indices = @transform_6, window_bounds = array<i64: 1, 93>}, {pipeline_mode = #tpu.pipeline_mode<synchronous>, transform_indices = @transform_7, window_bounds = array<i64: 93, 128>}, {pipeline_mode = #tpu.pipeline_mode<synchronous>, transform_indices = @transform_8, window_bounds = array<i64: 1, 128>}, {pipeline_mode = #tpu.pipeline_mode<synchronous>, transform_indices = @transform_9, window_bounds = array<i64: 1, 128>}, {pipeline_mode = #tpu.pipeline_mode<synchronous>, transform_indices = @transform_10, window_bounds = array<i64: 1, 1>}, {transform_indices = @transform_11, window_bounds = array<i64: 256, 1>}]} {
    %c0 = arith.constant 0 : index
    %c0_0 = arith.constant 0 : index
    %0 = vector.load %arg1[%c0, %c0_0] : memref<256x35xf32, #tpu.memory_space<vmem>>, vector<256x35xf32>
    %c0_1 = arith.constant 0 : index
    %c0_2 = arith.constant 0 : index
    %1 = vector.load %arg2[%c0_1, %c0_2] : memref<35x256xf32, #tpu.memory_space<vmem>>, vector<35x256xf32>
    %cst = arith.constant dense<0.000000e+00> : vector<256x256xf32>
    %2 = tpu.matmul %0, %1, %cst {dimension_numbers = #tpu.dot_dimension_numbers<[1], [0], [0], [1], [0, 0, 1, 1], [], []>} : vector<256x35xf32>, vector<35x256xf32>, vector<256x256xf32> -> vector<256x256xf32>
    %c0_3 = arith.constant 0 : index
    %c0_4 = arith.constant 0 : index
    %3 = vector.load %arg3[%c0_3, %c0_4] : memref<1x256xf32, #tpu.memory_space<vmem>>, vector<1x256xf32>
    %4 = vector.broadcast %3 : vector<1x256xf32> to vector<256x256xf32>
    %5 = arith.addf %2, %4 : vector<256x256xf32>
    %6 = vector.extract_strided_slice %5 {offsets = [0, 0], sizes = [256, 128], strides = [1, 1]} : vector<256x256xf32> to vector<256x128xf32>
    %cst_5 = arith.constant 0.000000e+00 : f32
    %7 = vector.broadcast %cst_5 : f32 to vector<256x128xf32>
    %8 = arith.maximumf %6, %7 : vector<256x128xf32>
    %9 = vector.extract_strided_slice %5 {offsets = [0, 128], sizes = [256, 128], strides = [1, 1]} : vector<256x256xf32> to vector<256x128xf32>
    %c0_6 = arith.constant 0 : index
    %c0_7 = arith.constant 0 : index
    %10 = vector.load %arg4[%c0_6, %c0_7] : memref<128x64xf32, #tpu.memory_space<vmem>>, vector<128x64xf32>
    %cst_8 = arith.constant dense<0.000000e+00> : vector<256x64xf32>
    %11 = tpu.matmul %8, %10, %cst_8 {dimension_numbers = #tpu.dot_dimension_numbers<[1], [0], [0], [1], [0, 0, 1, 1], [], []>} : vector<256x128xf32>, vector<128x64xf32>, vector<256x64xf32> -> vector<256x64xf32>
    %c0_9 = arith.constant 0 : index
    %c0_10 = arith.constant 0 : index
    %12 = vector.load %arg5[%c0_9, %c0_10] : memref<1x64xf32, #tpu.memory_space<vmem>>, vector<1x64xf32>
    %13 = vector.broadcast %12 : vector<1x64xf32> to vector<256x64xf32>
    %14 = arith.addf %11, %13 : vector<256x64xf32>
    %cst_11 = arith.constant 0.000000e+00 : f32
    %15 = vector.broadcast %cst_11 : f32 to vector<256x64xf32>
    %16 = arith.maximumf %14, %15 : vector<256x64xf32>
    %c0_12 = arith.constant 0 : index
    %c0_13 = arith.constant 0 : index
    %17 = vector.load %arg6[%c0_12, %c0_13] : memref<64x93xf32, #tpu.memory_space<vmem>>, vector<64x93xf32>
    %cst_14 = arith.constant dense<0.000000e+00> : vector<256x93xf32>
    %18 = tpu.matmul %16, %17, %cst_14 {dimension_numbers = #tpu.dot_dimension_numbers<[1], [0], [0], [1], [0, 0, 1, 1], [], []>} : vector<256x64xf32>, vector<64x93xf32>, vector<256x93xf32> -> vector<256x93xf32>
    %c0_15 = arith.constant 0 : index
    %c0_16 = arith.constant 0 : index
    %19 = vector.load %arg7[%c0_15, %c0_16] : memref<1x93xf32, #tpu.memory_space<vmem>>, vector<1x93xf32>
    %20 = vector.broadcast %19 : vector<1x93xf32> to vector<256x93xf32>
    %21 = arith.addf %18, %20 : vector<256x93xf32>
    %cst_17 = arith.constant 0.000000e+00 : f32
    %22 = vector.broadcast %cst_17 : f32 to vector<256x93xf32>
    %23 = arith.maximumf %21, %22 : vector<256x93xf32>
    %c0_18 = arith.constant 0 : index
    %c0_19 = arith.constant 0 : index
    %24 = vector.load %arg8[%c0_18, %c0_19] : memref<93x128xf32, #tpu.memory_space<vmem>>, vector<93x128xf32>
    %cst_20 = arith.constant dense<0.000000e+00> : vector<256x128xf32>
    %25 = tpu.matmul %23, %24, %cst_20 {dimension_numbers = #tpu.dot_dimension_numbers<[1], [0], [0], [1], [0, 0, 1, 1], [], []>} : vector<256x93xf32>, vector<93x128xf32>, vector<256x128xf32> -> vector<256x128xf32>
    %26 = arith.addf %25, %9 : vector<256x128xf32>
    %c0_21 = arith.constant 0 : index
    %c0_22 = arith.constant 0 : index
    %27 = vector.load %arg9[%c0_21, %c0_22] : memref<1x128xf32, #tpu.memory_space<vmem>>, vector<1x128xf32>
    %28 = vector.broadcast %27 : vector<1x128xf32> to vector<256x128xf32>
    %29 = arith.addf %26, %28 : vector<256x128xf32>
    %cst_23 = arith.constant 0.000000e+00 : f32
    %30 = vector.broadcast %cst_23 : f32 to vector<256x128xf32>
    %31 = arith.maximumf %29, %30 : vector<256x128xf32>
    %c0_24 = arith.constant 0 : index
    %c0_25 = arith.constant 0 : index
    %32 = vector.load %arg10[%c0_24, %c0_25] : memref<1x128xf32, #tpu.memory_space<vmem>>, vector<1x128xf32>
    %33 = vector.broadcast %32 : vector<1x128xf32> to vector<256x128xf32>
    %34 = arith.mulf %31, %33 : vector<256x128xf32>
    %cst_26 = arith.constant dense<0.000000e+00> : vector<256xf32>
    %35 = vector.multi_reduction <add>, %34, %cst_26 [1] : vector<256x128xf32> to vector<256xf32>
    %36 = vector.shape_cast %35 : vector<256xf32> to vector<256x1xf32>
    %c0_27 = arith.constant 0 : index
    %c0_28 = arith.constant 0 : index
    %37 = vector.load %arg11[%c0_27, %c0_28] : memref<1x1xf32, #tpu.memory_space<vmem>>, vector<1x1xf32>
    %38 = vector.broadcast %37 : vector<1x1xf32> to vector<256x1xf32>
    %39 = arith.addf %36, %38 : vector<256x1xf32>
    %40 = math.tanh %39 : vector<256x1xf32>
    %c0_29 = arith.constant 0 : index
    %c0_30 = arith.constant 0 : index
    %41 = vector.load %arg12[%c0_29, %c0_30] : memref<256x1xf32, #tpu.memory_space<vmem>>, vector<256x1xf32>
    tpu.vector_store %arg12[%c0_29, %c0_30], %40 {strides = array<i32>} : memref<256x1xf32, #tpu.memory_space<vmem>>, vector<256x1xf32>,
    return
  }
  func.func @transform_0(%arg0: i32) -> (i32, i32) {
    %c0_i32 = arith.constant 0 : i32
    %c0_i32_0 = arith.constant 0 : i32
    return %arg0, %c0_i32 : i32, i32
  }
  func.func @transform_1(%arg0: i32) -> (i32, i32) {
    %c0_i32 = arith.constant 0 : i32
    %c0_i32_0 = arith.constant 0 : i32
    %c0_i32_1 = arith.constant 0 : i32
    return %c0_i32, %c0_i32_0 : i32, i32
  }
  func.func @transform_2(%arg0: i32) -> (i32, i32) {
    %c0_i32 = arith.constant 0 : i32
    %c0_i32_0 = arith.constant 0 : i32
    %c0_i32_1 = arith.constant 0 : i32
    return %c0_i32, %c0_i32_0 : i32, i32
  }
  func.func @transform_3(%arg0: i32) -> (i32, i32) {
    %c0_i32 = arith.constant 0 : i32
    %c0_i32_0 = arith.constant 0 : i32
    %c0_i32_1 = arith.constant 0 : i32
    return %c0_i32, %c0_i32_0 : i32, i32
  }
  func.func @transform_4(%arg0: i32) -> (i32, i32) {
    %c0_i32 = arith.constant 0 : i32
    %c0_i32_0 = arith.constant 0 : i32
    %c0_i32_1 = arith.constant 0 : i32
    return %c0_i32, %c0_i32_0 : i32, i32
  }
  func.func @transform_5(%arg0: i32) -> (i32, i32) {
    %c0_i32 = arith.constant 0 : i32
    %c0_i32_0 = arith.constant 0 : i32
    %c0_i32_1 = arith.constant 0 : i32
    return %c0_i32, %c0_i32_0 : i32, i32
  }
  func.func @transform_6(%arg0: i32) -> (i32, i32) {
    %c0_i32 = arith.constant 0 : i32
    %c0_i32_0 = arith.constant 0 : i32
    %c0_i32_1 = arith.constant 0 : i32
    return %c0_i32, %c0_i32_0 : i32, i32
  }
  func.func @transform_7(%arg0: i32) -> (i32, i32) {
    %c0_i32 = arith.constant 0 : i32
    %c0_i32_0 = arith.constant 0 : i32
    %c0_i32_1 = arith.constant 0 : i32
    return %c0_i32, %c0_i32_0 : i32, i32
  }
  func.func @transform_8(%arg0: i32) -> (i32, i32) {
    %c0_i32 = arith.constant 0 : i32
    %c0_i32_0 = arith.constant 0 : i32
    %c0_i32_1 = arith.constant 0 : i32
    return %c0_i32, %c0_i32_0 : i32, i32
  }
  func.func @transform_9(%arg0: i32) -> (i32, i32) {
    %c0_i32 = arith.constant 0 : i32
    %c0_i32_0 = arith.constant 0 : i32
    %c0_i32_1 = arith.constant 0 : i32
    return %c0_i32, %c0_i32_0 : i32, i32
  }
  func.func @transform_10(%arg0: i32) -> (i32, i32) {
    %c0_i32 = arith.constant 0 : i32
    %c0_i32_0 = arith.constant 0 : i32
    %c0_i32_1 = arith.constant 0 : i32
    return %c0_i32, %c0_i32_0 : i32, i32
  }
  func.func @transform_11(%arg0: i32) -> (i32, i32) {
    %c0_i32 = arith.constant 0 : i32
    %c0_i32_0 = arith.constant 0 : i32
    return %arg0, %c0_i32 : i32, i32
  }
}

</mosaic_0001>

<llo_original>
// kernel: tpu_custom_call.1
$region0: #{tpu_custom_call.1}
  #allocation0 [shape = 'u32[]', space=smem, size = 0x4, offset = 0x4, fixed_abs, tag = 'smem constant byte address 0x4 - core index']
  #allocation1 [shape = 'u32[144,128]{1,0:T(1,128)}', space=vmem, size = 0x12000, scoped, tag = 'internal scratch']
  #allocation2 [shape = 'f32[1,1]{1,0:T(1,128)S(1)}', space=vmem, size = 0x200, scoped, tag = 'scoped memory for tpu_custom_call.1']
  %s0 = inlined_call_operand.vmem [shape: f32[512,35], index: 0, kind: input, shape index: {}]
  %s1 = inlined_call_operand.vmem [shape: f32[35,256], index: 1, kind: input, shape index: {}]
  %s2 = inlined_call_operand.vmem [shape: f32[1,256], index: 2, kind: input, shape index: {}]
  %s3 = inlined_call_operand.vmem [shape: f32[128,64], index: 3, kind: input, shape index: {}]
  %s4 = inlined_call_operand.vmem [shape: f32[1,64], index: 4, kind: input, shape index: {}]
  %s5 = inlined_call_operand.vmem [shape: f32[64,93], index: 5, kind: input, shape index: {}]
  %s6 = inlined_call_operand.vmem [shape: f32[1,93], index: 6, kind: input, shape index: {}]
  %s7 = inlined_call_operand.vmem [shape: f32[93,128], index: 7, kind: input, shape index: {}]
  %s8 = inlined_call_operand.vmem [shape: f32[1,128], index: 8, kind: input, shape index: {}]
  %s9 = inlined_call_operand.vmem [shape: f32[1,128], index: 9, kind: input, shape index: {}]
  %s10 = inlined_call_operand.<no memory space> [shape: f32[1,1], index: 10, kind: input, shape index: {}]
  %s11 = inlined_call_operand.vmem [shape: f32[512,1], index: 11, kind: output, shape index: {}]
  %s12 = sld [smem:[#allocation0]]
  $region77: #{tpu_custom_call.1} parent=0
    _
  %s14 = ssub.s32 1, %s12
  %s15 = scalar_select 0, %s14, %s12
  %v16 = vstv %s10
  %17 = vst [vmem:[#allocation2] sm:$0x1] %v16
  loop: start=0, step=1, limit=4
  $region2: #{tpu_custom_call.1} parent=0 // loop_pre_header
    _
  $region3: #{tpu_custom_call.1} parent=0 // loop_header
    %s19 = sphi 0, %s23
    %p20 = scmp.ge.s32.totalorder %s19, 4
    %s29 = sphi 0, %s31
    %s32 = sphi 0, %s29
    %s33 = sphi 0, %s32
    %s49 = sphi 0, %s33
    %s53 = sphi 0, %s53
    %s55 = sphi 0, %s53
    %s56 = sphi 0, %s55
    %s70 = sphi 0, %s56
    %s74 = sphi 0, %s74
    %s76 = sphi 0, %s74
    %s77 = sphi 0, %s76
    %s91 = sphi 0, %s77
    %s95 = sphi 0, %s95
    %s97 = sphi 0, %s95
    %s98 = sphi 0, %s97
    %s112 = sphi 0, %s98
    %s116 = sphi 0, %s116
    %s118 = sphi 0, %s116
    %s119 = sphi 0, %s118
    %s133 = sphi 0, %s119
    %s137 = sphi 0, %s137
    %s139 = sphi 0, %s137
    %s140 = sphi 0, %s139
    %s154 = sphi 0, %s140
    %s158 = sphi 0, %s158
    %s160 = sphi 0, %s158
    %s161 = sphi 0, %s160
    %s175 = sphi 0, %s161
    %s179 = sphi 0, %s179
    %s181 = sphi 0, %s179
    %s182 = sphi 0, %s181
    %s196 = sphi 0, %s182
    %s200 = sphi 0, %s200
    %s202 = sphi 0, %s200
    %s203 = sphi 0, %s202
    %s217 = sphi 0, %s203
    %s221 = sphi 0, %s221
    %s223 = sphi 0, %s221
    %s224 = sphi 0, %s223
    %s238 = sphi 0, %s224
    %s242 = sphi 0, %s242
    %s244 = sphi 0, %s242
    %s245 = sphi 0, %s244
    %s259 = sphi 0, %s245
    %s265 = sphi 0, %s267
    %s268 = sphi 0, %s265
    %s269 = sphi 0, %s268
    %s285 = sphi 0, %s269
  $region4: #{tpu_custom_call.1} parent=0 // loop_header_branch
    %22 = sbr.rel (%p20) target = $region8
  $region5: #{tpu_custom_call.1} parent=0 // loop_body
    %s24 = ssub.s32 %s19, 1
    %s25 = ssub.s32 %s19, 2
    %s26 = sadd.s32 %s19, 1
    %s27 = ssub.s32 %s19, %s26
    %p28 = scmp.eq.s32.totalorder %s27, 0
    %s30 = sadd.s32 %s29, 1
    %s31 = scalar_select %p28, %s29, %s30
    %p34 = pneg %p28
    %p35 = scmp.eq.s32.totalorder %s19, 1
    %p36 = por %p34, %p35
    %p37 = scmp.ne.s32.totalorder %s29, %s32
    %p38 = scmp.eq.s32.totalorder %s19, 0
    %p39 = por %p37, %p38
    %p40 = scmp.ne.s32.totalorder %s29, %s32
    %p41 = scmp.eq.s32.totalorder %s24, 1
    %p42 = por %p40, %p41
    %p43 = scmp.ne.s32.totalorder %s32, %s33
    %p44 = scmp.eq.s32.totalorder %s24, 0
    %p45 = por %p43, %p44
    %p46 = scmp.ne.s32.totalorder %s32, %s33
    %p47 = scmp.eq.s32.totalorder %s25, 1
    %p48 = por %p46, %p47
    %p50 = scmp.ne.s32.totalorder %s33, %s49
    %p51 = scmp.eq.s32.totalorder %s25, 0
    %p52 = por %p50, %p51
    %s54 = sadd.s32 %s53, 1
    %p57 = scmp.eq.s32.totalorder %s19, 1
    %p58 = scmp.ne.s32.totalorder %s53, %s55
    %p59 = scmp.eq.s32.totalorder %s19, 0
    %p60 = por %p58, %p59
    %p61 = scmp.ne.s32.totalorder %s53, %s55
    %p62 = scmp.eq.s32.totalorder %s24, 1
    %p63 = por %p61, %p62
    %p64 = scmp.ne.s32.totalorder %s55, %s56
    %p65 = scmp.eq.s32.totalorder %s24, 0
    %p66 = por %p64, %p65
    %p67 = scmp.ne.s32.totalorder %s55, %s56
    %p68 = scmp.eq.s32.totalorder %s25, 1
    %p69 = por %p67, %p68
    %p71 = scmp.ne.s32.totalorder %s56, %s70
    %p72 = scmp.eq.s32.totalorder %s25, 0
    %p73 = por %p71, %p72
    %s75 = sadd.s32 %s74, 1
    %p78 = scmp.eq.s32.totalorder %s19, 1
    %p79 = scmp.ne.s32.totalorder %s74, %s76
    %p80 = scmp.eq.s32.totalorder %s19, 0
    %p81 = por %p79, %p80
    %p82 = scmp.ne.s32.totalorder %s74, %s76
    %p83 = scmp.eq.s32.totalorder %s24, 1
    %p84 = por %p82, %p83
    %p85 = scmp.ne.s32.totalorder %s76, %s77
    %p86 = scmp.eq.s32.totalorder %s24, 0
    %p87 = por %p85, %p86
    %p88 = scmp.ne.s32.totalorder %s76, %s77
    %p89 = scmp.eq.s32.totalorder %s25, 1
    %p90 = por %p88, %p89
    %p92 = scmp.ne.s32.totalorder %s77, %s91
    %p93 = scmp.eq.s32.totalorder %s25, 0
    %p94 = por %p92, %p93
    %s96 = sadd.s32 %s95, 1
    %p99 = scmp.eq.s32.totalorder %s19, 1
    %p100 = scmp.ne.s32.totalorder %s95, %s97
    %p101 = scmp.eq.s32.totalorder %s19, 0
    %p102 = por %p100, %p101
    %p103 = scmp.ne.s32.totalorder %s95, %s97
    %p104 = scmp.eq.s32.totalorder %s24, 1
    %p105 = por %p103, %p104
    %p106 = scmp.ne.s32.totalorder %s97, %s98
    %p107 = scmp.eq.s32.totalorder %s24, 0
    %p108 = por %p106, %p107
    %p109 = scmp.ne.s32.totalorder %s97, %s98
    %p110 = scmp.eq.s32.totalorder %s25, 1
    %p111 = por %p109, %p110
    %p113 = scmp.ne.s32.totalorder %s98, %s112
    %p114 = scmp.eq.s32.totalorder %s25, 0
    %p115 = por %p113, %p114
    %s117 = sadd.s32 %s116, 1
    %p120 = scmp.eq.s32.totalorder %s19, 1
    %p121 = scmp.ne.s32.totalorder %s116, %s118
    %p122 = scmp.eq.s32.totalorder %s19, 0
    %p123 = por %p121, %p122
    %p124 = scmp.ne.s32.totalorder %s116, %s118
    %p125 = scmp.eq.s32.totalorder %s24, 1
    %p126 = por %p124, %p125
    %p127 = scmp.ne.s32.totalorder %s118, %s119
    %p128 = scmp.eq.s32.totalorder %s24, 0
    %p129 = por %p127, %p128
    %p130 = scmp.ne.s32.totalorder %s118, %s119
    %p131 = scmp.eq.s32.totalorder %s25, 1
    %p132 = por %p130, %p131
    %p134 = scmp.ne.s32.totalorder %s119, %s133
    %p135 = scmp.eq.s32.totalorder %s25, 0
    %p136 = por %p134, %p135
    %s138 = sadd.s32 %s137, 1
    %p141 = scmp.eq.s32.totalorder %s19, 1
    %p142 = scmp.ne.s32.totalorder %s137, %s139
    %p143 = scmp.eq.s32.totalorder %s19, 0
    %p144 = por %p142, %p143
    %p145 = scmp.ne.s32.totalorder %s137, %s139
    %p146 = scmp.eq.s32.totalorder %s24, 1
    %p147 = por %p145, %p146
    %p148 = scmp.ne.s32.totalorder %s139, %s140
    %p149 = scmp.eq.s32.totalorder %s24, 0
    %p150 = por %p148, %p149
    %p151 = scmp.ne.s32.totalorder %s139, %s140
    %p152 = scmp.eq.s32.totalorder %s25, 1
    %p153 = por %p151, %p152
    %p155 = scmp.ne.s32.totalorder %s140, %s154
    %p156 = scmp.eq.s32.totalorder %s25, 0
    %p157 = por %p155, %p156
    %s159 = sadd.s32 %s158, 1
    %p162 = scmp.eq.s32.totalorder %s19, 1
    %p163 = scmp.ne.s32.totalorder %s158, %s160
    %p164 = scmp.eq.s32.totalorder %s19, 0
    %p165 = por %p163, %p164
    %p166 = scmp.ne.s32.totalorder %s158, %s160
    %p167 = scmp.eq.s32.totalorder %s24, 1
    %p168 = por %p166, %p167
    %p169 = scmp.ne.s32.totalorder %s160, %s161
    %p170 = scmp.eq.s32.totalorder %s24, 0
    %p171 = por %p169, %p170
    %p172 = scmp.ne.s32.totalorder %s160, %s161
    %p173 = scmp.eq.s32.totalorder %s25, 1
    %p174 = por %p172, %p173
    %p176 = scmp.ne.s32.totalorder %s161, %s175
    %p177 = scmp.eq.s32.totalorder %s25, 0
    %p178 = por %p176, %p177
    %s180 = sadd.s32 %s179, 1
    %p183 = scmp.eq.s32.totalorder %s19, 1
    %p184 = scmp.ne.s32.totalorder %s179, %s181
    %p185 = scmp.eq.s32.totalorder %s19, 0
    %p186 = por %p184, %p185
    %p187 = scmp.ne.s32.totalorder %s179, %s181
    %p188 = scmp.eq.s32.totalorder %s24, 1
    %p189 = por %p187, %p188
    %p190 = scmp.ne.s32.totalorder %s181, %s182
    %p191 = scmp.eq.s32.totalorder %s24, 0
    %p192 = por %p190, %p191
    %p193 = scmp.ne.s32.totalorder %s181, %s182
    %p194 = scmp.eq.s32.totalorder %s25, 1
    %p195 = por %p193, %p194
    %p197 = scmp.ne.s32.totalorder %s182, %s196
    %p198 = scmp.eq.s32.totalorder %s25, 0
    %p199 = por %p197, %p198
    %s201 = sadd.s32 %s200, 1
    %p204 = scmp.eq.s32.totalorder %s19, 1
    %p205 = scmp.ne.s32.totalorder %s200, %s202
    %p206 = scmp.eq.s32.totalorder %s19, 0
    %p207 = por %p205, %p206
    %p208 = scmp.ne.s32.totalorder %s200, %s202
    %p209 = scmp.eq.s32.totalorder %s24, 1
    %p210 = por %p208, %p209
    %p211 = scmp.ne.s32.totalorder %s202, %s203
    %p212 = scmp.eq.s32.totalorder %s24, 0
    %p213 = por %p211, %p212
    %p214 = scmp.ne.s32.totalorder %s202, %s203
    %p215 = scmp.eq.s32.totalorder %s25, 1
    %p216 = por %p214, %p215
    %p218 = scmp.ne.s32.totalorder %s203, %s217
    %p219 = scmp.eq.s32.totalorder %s25, 0
    %p220 = por %p218, %p219
    %s222 = sadd.s32 %s221, 1
    %p225 = scmp.eq.s32.totalorder %s19, 1
    %p226 = scmp.ne.s32.totalorder %s221, %s223
    %p227 = scmp.eq.s32.totalorder %s19, 0
    %p228 = por %p226, %p227
    %p229 = scmp.ne.s32.totalorder %s221, %s223
    %p230 = scmp.eq.s32.totalorder %s24, 1
    %p231 = por %p229, %p230
    %p232 = scmp.ne.s32.totalorder %s223, %s224
    %p233 = scmp.eq.s32.totalorder %s24, 0
    %p234 = por %p232, %p233
    %p235 = scmp.ne.s32.totalorder %s223, %s224
    %p236 = scmp.eq.s32.totalorder %s25, 1
    %p237 = por %p235, %p236
    %p239 = scmp.ne.s32.totalorder %s224, %s238
    %p240 = scmp.eq.s32.totalorder %s25, 0
    %p241 = por %p239, %p240
    %s243 = sadd.s32 %s242, 1
    %p246 = scmp.eq.s32.totalorder %s19, 1
    %p247 = scmp.ne.s32.totalorder %s242, %s244
    %p248 = scmp.eq.s32.totalorder %s19, 0
    %p249 = por %p247, %p248
    %p250 = scmp.ne.s32.totalorder %s242, %s244
    %p251 = scmp.eq.s32.totalorder %s24, 1
    %p252 = por %p250, %p251
    %p253 = scmp.ne.s32.totalorder %s244, %s245
    %p254 = scmp.eq.s32.totalorder %s24, 0
    %p255 = por %p253, %p254
    %p256 = scmp.ne.s32.totalorder %s244, %s245
    %p257 = scmp.eq.s32.totalorder %s25, 1
    %p258 = por %p256, %p257
    %p260 = scmp.ne.s32.totalorder %s245, %s259
    %p261 = scmp.eq.s32.totalorder %s25, 0
    %p262 = por %p260, %p261
    %s263 = ssub.s32 %s19, %s26
    %p264 = scmp.eq.s32.totalorder %s263, 0
    %s266 = sadd.s32 %s265, 1
    %s267 = scalar_select %p264, %s265, %s266
    %p270 = pneg %p264
    %p271 = scmp.eq.s32.totalorder %s19, 1
    %p272 = por %p270, %p271
    %p273 = scmp.ne.s32.totalorder %s265, %s268
    %p274 = scmp.eq.s32.totalorder %s19, 0
    %p275 = por %p273, %p274
    %p276 = scmp.ne.s32.totalorder %s265, %s268
    %p277 = scmp.eq.s32.totalorder %s24, 1
    %p278 = por %p276, %p277
    %p279 = scmp.ne.s32.totalorder %s268, %s269
    %p280 = scmp.eq.s32.totalorder %s24, 0
    %p281 = por %p279, %p280
    %p282 = scmp.ne.s32.totalorder %s268, %s269
    %p283 = scmp.eq.s32.totalorder %s25, 1
    %p284 = por %p282, %p283
    %p286 = scmp.ne.s32.totalorder %s269, %s285
    %p287 = scmp.eq.s32.totalorder %s25, 0
    %p288 = por %p286, %p287
    %p289 = scmp.le.s32.totalorder 1, %s19
    %p290 = scmp.lt.s32.totalorder %s19, 3
    %p291 = pnand %p289, %p290
    %p292 = pneg %p291
    // Predicated region
    $region9: #{tpu_custom_call.1} parent=5 // pred_check
      _
    $region10: #{tpu_custom_call.1} parent=5 // pred_check_branch
      %294 = sbr.rel (%p291) target = $region12
    $region11: #{tpu_custom_call.1} parent=5 // pred_region
      %s295 = ssub.s32 %s19, 1
      // Predicated region
      $region13: #{tpu_custom_call.1} parent=11 // pred_check
        %p296 = pneg %p66
      $region14: #{tpu_custom_call.1} parent=11 // pred_check_branch
        %298 = sbr.rel (%p296) target = $region16
      $region15: #{tpu_custom_call.1} parent=11 // pred_region
        _
      $region16: #{tpu_custom_call.1} parent=11 // pred_fallthru
        _
      // Predicated region
      $region17: #{tpu_custom_call.1} parent=11 // pred_check
        %p299 = pneg %p87
      $region18: #{tpu_custom_call.1} parent=11 // pred_check_branch
        %301 = sbr.rel (%p299) target = $region20
      $region19: #{tpu_custom_call.1} parent=11 // pred_region
        _
      $region20: #{tpu_custom_call.1} parent=11 // pred_fallthru
        _
      // Predicated region
      $region21: #{tpu_custom_call.1} parent=11 // pred_check
        %p302 = pneg %p108
      $region22: #{tpu_custom_call.1} parent=11 // pred_check_branch
        %304 = sbr.rel (%p302) target = $region24
      $region23: #{tpu_custom_call.1} parent=11 // pred_region
        _
      $region24: #{tpu_custom_call.1} parent=11 // pred_fallthru
        _
      // Predicated region
      $region25: #{tpu_custom_call.1} parent=11 // pred_check
        %p305 = pneg %p129
      $region26: #{tpu_custom_call.1} parent=11 // pred_check_branch
        %307 = sbr.rel (%p305) target = $region28
      $region27: #{tpu_custom_call.1} parent=11 // pred_region
        _
      $region28: #{tpu_custom_call.1} parent=11 // pred_fallthru
        _
      // Predicated region
      $region29: #{tpu_custom_call.1} parent=11 // pred_check
        %p308 = pneg %p150
      $region30: #{tpu_custom_call.1} parent=11 // pred_check_branch
        %310 = sbr.rel (%p308) target = $region32
      $region31: #{tpu_custom_call.1} parent=11 // pred_region
        _
      $region32: #{tpu_custom_call.1} parent=11 // pred_fallthru
        _
      // Predicated region
      $region33: #{tpu_custom_call.1} parent=11 // pred_check
        %p311 = pneg %p171
      $region34: #{tpu_custom_call.1} parent=11 // pred_check_branch
        %313 = sbr.rel (%p311) target = $region36
      $region35: #{tpu_custom_call.1} parent=11 // pred_region
        _
      $region36: #{tpu_custom_call.1} parent=11 // pred_fallthru
        _
      // Predicated region
      $region37: #{tpu_custom_call.1} parent=11 // pred_check
        %p314 = pneg %p192
      $region38: #{tpu_custom_call.1} parent=11 // pred_check_branch
        %316 = sbr.rel (%p314) target = $region40
      $region39: #{tpu_custom_call.1} parent=11 // pred_region
        _
      $region40: #{tpu_custom_call.1} parent=11 // pred_fallthru
        _
      // Predicated region
      $region41: #{tpu_custom_call.1} parent=11 // pred_check
        %p317 = pneg %p213
      $region42: #{tpu_custom_call.1} parent=11 // pred_check_branch
        %319 = sbr.rel (%p317) target = $region44
      $region43: #{tpu_custom_call.1} parent=11 // pred_region
        _
      $region44: #{tpu_custom_call.1} parent=11 // pred_fallthru
        _
      // Predicated region
      $region45: #{tpu_custom_call.1} parent=11 // pred_check
        %p320 = pneg %p234
      $region46: #{tpu_custom_call.1} parent=11 // pred_check_branch
        %322 = sbr.rel (%p320) target = $region48
      $region47: #{tpu_custom_call.1} parent=11 // pred_region
        _
      $region48: #{tpu_custom_call.1} parent=11 // pred_fallthru
        _
      // Predicated region
      $region49: #{tpu_custom_call.1} parent=11 // pred_check
        %p323 = pneg %p255
      $region50: #{tpu_custom_call.1} parent=11 // pred_check_branch
        %325 = sbr.rel (%p323) target = $region52
      $region51: #{tpu_custom_call.1} parent=11 // pred_region
        _
      $region52: #{tpu_custom_call.1} parent=11 // pred_fallthru
        _
    $region12: #{tpu_custom_call.1} parent=5 // pred_fallthru
      _
    %p326 = scmp.lt.s32.totalorder %s19, 2
    // Predicated region
    $region53: #{tpu_custom_call.1} parent=5 // pred_check
      %p327 = pneg %p326
    $region54: #{tpu_custom_call.1} parent=5 // pred_check_branch
      %329 = sbr.rel (%p327) target = $region56
    $region55: #{tpu_custom_call.1} parent=5 // pred_region
      // Predicated region
      $region57: #{tpu_custom_call.1} parent=55 // pred_check
        %p330 = pneg %p39
      $region58: #{tpu_custom_call.1} parent=55 // pred_check_branch
        %332 = sbr.rel (%p330) target = $region60
      $region59: #{tpu_custom_call.1} parent=55 // pred_region
        %s333 = smul.u32 32, %s19
        %p334 = scmp.lt.s32.totalorder %s333, 63
        %s335 = scalar_select %p334, %s333, 63
        %s336 = smul.addr %s335, 8
        %s337 = scalar_lea.vmem %s0, %s336
        %s338 = smul.u32 32, %s19
      $region60: #{tpu_custom_call.1} parent=55 // pred_fallthru
        _
    $region56: #{tpu_custom_call.1} parent=5 // pred_fallthru
      _
    %p339 = scmp.le.s32.totalorder 1, %s19
    %p340 = scmp.lt.s32.totalorder %s19, 3
    %p341 = pnand %p339, %p340
    %p342 = pneg %p341
    // Predicated region
    $region61: #{tpu_custom_call.1} parent=5 // pred_check
      _
    $region62: #{tpu_custom_call.1} parent=5 // pred_check_branch
      %344 = sbr.rel (%p341) target = $region64
    $region63: #{tpu_custom_call.1} parent=5 // pred_region
      %s345 = ssub.s32 %s19, 1
      %s346 = smul.u32 32, %s24
      %p347 = scmp.lt.s32.totalorder %s346, 63
      %s348 = scalar_select %p347, %s346, 63
      %s349 = smul.addr %s348, 8
      %s350 = scalar_lea.vmem %s0, %s349
      %p351 = pneg %p45
      %p352 = pneg %p42
      %p353 = pneg %p66
      %p354 = pneg %p63
      %p355 = pneg %p87
      %p356 = pneg %p84
      %p357 = pneg %p108
      %p358 = pneg %p105
      %p359 = pneg %p129
      %p360 = pneg %p126
      %p361 = pneg %p150
      %p362 = pneg %p147
      %p363 = pneg %p171
      %p364 = pneg %p168
      %p365 = pneg %p192
      %p366 = pneg %p189
      %p367 = pneg %p213
      %p368 = pneg %p210
      %p369 = pneg %p234
      %p370 = pneg %p231
      %p371 = pneg %p255
      %p372 = pneg %p252
      %p373 = pneg %p281
      %p374 = pneg %p278
      %s375 = smul.u32 32, %s24
      %p376 = scmp.lt.s32.totalorder %s375, 63
      %s377 = scalar_select %p376, %s375, 63
      %s378 = smul.addr %s377, 8
      %s379 = scalar_lea.vmem %s11, %s378
      %s380 = smul.u32 32, %s24
      %p381 = scmp.lt.s32.totalorder %s380, 63
      %s382 = scalar_select %p381, %s380, 63
      %s383 = smul.addr %s382, 8
      %s384 = scalar_lea.vmem %s0, %s383
      %s385 = smul.u32 32, %s24
      %s386 = smul.u32 32, %s24
      %p387 = scmp.lt.s32.totalorder %s386, 63
      %s388 = scalar_select %p387, %s386, 63
      %s389 = smul.addr %s388, 8
      %s390 = scalar_lea.vmem %s11, %s389
      %s391 = smul.u32 32, %s24
      %v392 = vld [vmem:[%s384] sm:$0xff]
      %v393 = vld [vmem:[%s384 + $0x8] sm:$0xff]
      %v394 = vld [vmem:[%s384 + $0x10] sm:$0xff]
      %v395 = vld [vmem:[%s384 + $0x18] sm:$0xff]
      %v396 = vld [vmem:[%s384 + $0x20] sm:$0xff]
      %v397 = vld [vmem:[%s384 + $0x28] sm:$0xff]
      %v398 = vld [vmem:[%s384 + $0x30] sm:$0xff]
      %v399 = vld [vmem:[%s384 + $0x38] sm:$0xff]
      %v400 = vld [vmem:[%s384 + $0x40] sm:$0xff]
      %v401 = vld [vmem:[%s384 + $0x48] sm:$0xff]
      %v402 = vld [vmem:[%s384 + $0x50] sm:$0xff]
      %v403 = vld [vmem:[%s384 + $0x58] sm:$0xff]
      %v404 = vld [vmem:[%s384 + $0x60] sm:$0xff]
      %v405 = vld [vmem:[%s384 + $0x68] sm:$0xff]
      %v406 = vld [vmem:[%s384 + $0x70] sm:$0xff]
      %v407 = vld [vmem:[%s384 + $0x78] sm:$0xff]
      %v408 = vld [vmem:[%s384 + $0x80] sm:$0xff]
      %v409 = vld [vmem:[%s384 + $0x88] sm:$0xff]
      %v410 = vld [vmem:[%s384 + $0x90] sm:$0xff]
      %v411 = vld [vmem:[%s384 + $0x98] sm:$0xff]
      %v412 = vld [vmem:[%s384 + $0xa0] sm:$0xff]
      %v413 = vld [vmem:[%s384 + $0xa8] sm:$0xff]
      %v414 = vld [vmem:[%s384 + $0xb0] sm:$0xff]
      %v415 = vld [vmem:[%s384 + $0xb8] sm:$0xff]
      %v416 = vld [vmem:[%s384 + $0xc0] sm:$0xff]
      %v417 = vld [vmem:[%s384 + $0xc8] sm:$0xff]
      %v418 = vld [vmem:[%s384 + $0xd0] sm:$0xff]
      %v419 = vld [vmem:[%s384 + $0xd8] sm:$0xff]
      %v420 = vld [vmem:[%s384 + $0xe0] sm:$0xff]
      %v421 = vld [vmem:[%s384 + $0xe8] sm:$0xff]
      %v422 = vld [vmem:[%s384 + $0xf0] sm:$0xff]
      %v423 = vld [vmem:[%s384 + $0xf8] sm:$0xff]
      %v424 = vld [vmem:[%s1] sm:$0xff]
      %v425 = vld [vmem:[%s1 + $0x8] sm:$0xff]
      %v426 = vld [vmem:[%s1 + $0x10] sm:$0xff]
      %v427 = vld [vmem:[%s1 + $0x18] sm:$0xff]
      %v428 = vld [vmem:[%s1 + $0x20] sm:$0xff]
      %v429 = vld [vmem:[%s1 + $0x28] sm:$0xff]
      %v430 = vld [vmem:[%s1 + $0x30] sm:$0xff]
      %v431 = vld [vmem:[%s1 + $0x38] sm:$0xff]
      %v432 = vld [vmem:[%s1 + $0x40] sm:$0x7]
      %v433 = vld [vmem:[%s1 + $0x48] sm:$0x7]
      %v434 = vld [vmem:[%s2] sm:$0x3]
      %v436 = vlaneseq
      %v437 = vshrl.u32 %v436, 7
      %v438 = vsub.s32 0, %v437
      %v439 = vrot.slane %v434, %v438
      %v440 = vlaneseq
      %v441 = vshrl.u32 %v440, 7
      %v442 = vsub.s32 1, %v441
      %v443 = vrot.slane %v434, %v442
      %vm446 = vcmask 285696
      %v448 = vsel %vm446, %v392, 0
      %v451 = vsel %vm446, %v393, 0
      %v454 = vsel %vm446, %v394, 0
      %v457 = vsel %vm446, %v395, 0
      %v460 = vsel %vm446, %v396, 0
      %v463 = vsel %vm446, %v397, 0
      %v466 = vsel %vm446, %v398, 0
      %v469 = vsel %vm446, %v399, 0
      %v472 = vsel %vm446, %v400, 0
      %v475 = vsel %vm446, %v401, 0
      %v478 = vsel %vm446, %v402, 0
      %v481 = vsel %vm446, %v403, 0
      %v484 = vsel %vm446, %v404, 0
      %v487 = vsel %vm446, %v405, 0
      %v490 = vsel %vm446, %v406, 0
      %v493 = vsel %vm446, %v407, 0
      %v496 = vsel %vm446, %v408, 0
      %v499 = vsel %vm446, %v409, 0
      %v502 = vsel %vm446, %v410, 0
      %v505 = vsel %vm446, %v411, 0
      %v508 = vsel %vm446, %v412, 0
      %v511 = vsel %vm446, %v413, 0
      %v514 = vsel %vm446, %v414, 0
      %v517 = vsel %vm446, %v415, 0
      %v520 = vsel %vm446, %v416, 0
      %v523 = vsel %vm446, %v417, 0
      %v526 = vsel %vm446, %v418, 0
      %v529 = vsel %vm446, %v419, 0
      %v532 = vsel %vm446, %v420, 0
      %v535 = vsel %vm446, %v421, 0
      %v538 = vsel %vm446, %v422, 0
      %v541 = vsel %vm446, %v423, 0
      %vm543 = vcmask 1042432
      %v545 = vsel %vm543, %v432, 0
      %v548 = vsel %vm543, %v433, 0
      %550 = vmatprep.subr.mxu0 0.0
      %551 = vmatpush1.msra.mxu0 0.0
      %552 = vmatprep.subr.mxu0 0.0
      %553 = vmatpush1.msra.mxu0 0.0
      %554 = vmatprep.subr.mxu0 0.0
      %555 = vmatpush1.msra.mxu0 0.0
      %556 = vmatprep.subr.mxu0 0.0
      %557 = vmatpush1.msra.mxu0 0.0
      %558 = vmatprep.subr.mxu0 0.0
      %559 = vmatpush1.msra.mxu0 0.0
      %560 = vmatprep.subr.mxu0 0.0
      %561 = vmatpush1.msra.mxu0 0.0
      %562 = vmatprep.subr.mxu0 0.0
      %563 = vmatpush1.msra.mxu0 0.0
      %564 = vmatprep.subr.mxu0 0.0
      %565 = vmatpush1.msra.mxu0 0.0
      %566 = vmatprep.subr.mxu0 0.0
      %567 = vmatpush1.msra.mxu0 0.0
      %568 = vmatprep.subr.mxu0 0.0
      %569 = vmatpush1.msra.mxu0 0.0
      %570 = vmatprep.subr.mxu0 0.0
      %571 = vmatpush1.msra.mxu0 0.0
      %572 = vmatprep.subr.mxu0 %v548
      %573 = vmatpush1.msra.mxu0 %v545
      %574 = vmatprep.subr.mxu0 %v431
      %575 = vmatpush1.msra.mxu0 %v430
      %576 = vmatprep.subr.mxu0 %v429
      %577 = vmatpush1.msra.mxu0 %v428
      %578 = vmatprep.subr.mxu0 %v427
      %579 = vmatpush1.msra.mxu0 %v426
      %580 = vmatprep.subr.mxu0 %v425
      %581 = vmatpush1.msra.mxu0 %v424
      %582 = vmatprep.subr.mxu0 0.0
      %583 = vmatpush2.msra.mxu0 0.0
      %584 = vmatprep.subr.mxu0 0.0
      %585 = vmatpush2.msra.mxu0 0.0
      %586 = vmatprep.subr.mxu0 0.0
      %587 = vmatpush2.msra.mxu0 0.0
      %588 = vmatprep.subr.mxu0 0.0
      %589 = vmatpush2.msra.mxu0 0.0
      %590 = vmatprep.subr.mxu0 0.0
      %591 = vmatpush2.msra.mxu0 0.0
      %592 = vmatprep.subr.mxu0 0.0
      %593 = vmatpush2.msra.mxu0 0.0
      %594 = vmatprep.subr.mxu0 0.0
      %595 = vmatpush2.msra.mxu0 0.0
      %596 = vmatprep.subr.mxu0 0.0
      %597 = vmatpush2.msra.mxu0 0.0
      %598 = vmatprep.subr.mxu0 0.0
      %599 = vmatpush2.msra.mxu0 0.0
      %600 = vmatprep.subr.mxu0 0.0
      %601 = vmatpush2.msra.mxu0 0.0
      %602 = vmatprep.subr.mxu0 0.0
      %603 = vmatpush2.msra.mxu0 0.0
      %604 = vmatprep.subr.mxu0 0.0
      %605 = vmatpush2.msra.mxu0 0.0
      %606 = vmatprep.subr.mxu0 0.0
      %607 = vmatpush2.msra.mxu0 0.0
      %608 = vmatprep.subr.mxu0 0.0
      %609 = vmatpush2.msra.mxu0 0.0
      %610 = vmatprep.subr.mxu0 0.0
      %611 = vmatpush2.msra.mxu0 0.0
      %612 = vmatprep.subr.mxu0 0.0
      %613 = vmatpush2.msra.mxu0 0.0
      %614 = vmatprep.mubr.f32.mxu0 0.0
      %615 = vmatmul.mubr.f32.gmra.mxu0 %v448
      %v616 = vpop.f32.mrf.mxu0
      %v617 = vadd.f32 %v439, %v616
      %v618 = vpop.f32.mrf.mxu0
      %v619 = vadd.f32 %v443, %v618
      %620 = vmatprep.mubr.f32.mxu0 0.0
      %621 = vmatmul.mubr.f32.gmra.mxu0 %v451
      %v622 = vpop.f32.mrf.mxu0
      %v623 = vadd.f32 %v439, %v622
      %v624 = vpop.f32.mrf.mxu0
      %v625 = vadd.f32 %v443, %v624
      %626 = vmatprep.mubr.f32.mxu0 0.0
      %627 = vmatmul.mubr.f32.gmra.mxu0 %v454
      %v628 = vpop.f32.mrf.mxu0
      %v629 = vadd.f32 %v439, %v628
      %v630 = vpop.f32.mrf.mxu0
      %v631 = vadd.f32 %v443, %v630
      %632 = vmatprep.mubr.f32.mxu0 0.0
      %633 = vmatmul.mubr.f32.gmra.mxu0 %v457
      %v634 = vpop.f32.mrf.mxu0
      %v635 = vadd.f32 %v439, %v634
      %v636 = vpop.f32.mrf.mxu0
      %v637 = vadd.f32 %v443, %v636
      %638 = vmatprep.mubr.f32.mxu0 0.0
      %639 = vmatmul.mubr.f32.gmra.mxu0 %v460
      %v640 = vpop.f32.mrf.mxu0
      %v641 = vadd.f32 %v439, %v640
      %v642 = vpop.f32.mrf.mxu0
      %v643 = vadd.f32 %v443, %v642
      %644 = vmatprep.mubr.f32.mxu0 0.0
      %645 = vmatmul.mubr.f32.gmra.mxu0 %v463
      %v646 = vpop.f32.mrf.mxu0
      %v647 = vadd.f32 %v439, %v646
      %v648 = vpop.f32.mrf.mxu0
      %v649 = vadd.f32 %v443, %v648
      %650 = vmatprep.mubr.f32.mxu0 0.0
      %651 = vmatmul.mubr.f32.gmra.mxu0 %v466
      %v652 = vpop.f32.mrf.mxu0
      %v653 = vadd.f32 %v439, %v652
      %v654 = vpop.f32.mrf.mxu0
      %v655 = vadd.f32 %v443, %v654
      %656 = vmatprep.mubr.f32.mxu0 0.0
      %657 = vmatmul.mubr.f32.gmra.mxu0 %v469
      %v658 = vpop.f32.mrf.mxu0
      %v659 = vadd.f32 %v439, %v658
      %v660 = vpop.f32.mrf.mxu0
      %v661 = vadd.f32 %v443, %v660
      %662 = vmatprep.mubr.f32.mxu0 0.0
      %663 = vmatmul.mubr.f32.gmra.mxu0 %v472
      %v664 = vpop.f32.mrf.mxu0
      %v665 = vadd.f32 %v439, %v664
      %v666 = vpop.f32.mrf.mxu0
      %v667 = vadd.f32 %v443, %v666
      %668 = vmatprep.mubr.f32.mxu0 0.0
      %669 = vmatmul.mubr.f32.gmra.mxu0 %v475
      %v670 = vpop.f32.mrf.mxu0
      %v671 = vadd.f32 %v439, %v670
      %v672 = vpop.f32.mrf.mxu0
      %v673 = vadd.f32 %v443, %v672
      %674 = vmatprep.mubr.f32.mxu0 0.0
      %675 = vmatmul.mubr.f32.gmra.mxu0 %v478
      %v676 = vpop.f32.mrf.mxu0
      %v677 = vadd.f32 %v439, %v676
      %v678 = vpop.f32.mrf.mxu0
      %v679 = vadd.f32 %v443, %v678
      %680 = vmatprep.mubr.f32.mxu0 0.0
      %681 = vmatmul.mubr.f32.gmra.mxu0 %v481
      %v682 = vpop.f32.mrf.mxu0
      %v683 = vadd.f32 %v439, %v682
      %v684 = vpop.f32.mrf.mxu0
      %v685 = vadd.f32 %v443, %v684
      %686 = vmatprep.mubr.f32.mxu0 0.0
      %687 = vmatmul.mubr.f32.gmra.mxu0 %v484
      %v688 = vpop.f32.mrf.mxu0
      %v689 = vadd.f32 %v439, %v688
      %v690 = vpop.f32.mrf.mxu0
      %v691 = vadd.f32 %v443, %v690
      %692 = vmatprep.mubr.f32.mxu0 0.0
      %693 = vmatmul.mubr.f32.gmra.mxu0 %v487
      %v694 = vpop.f32.mrf.mxu0
      %v695 = vadd.f32 %v439, %v694
      %v696 = vpop.f32.mrf.mxu0
      %v697 = vadd.f32 %v443, %v696
      %698 = vmatprep.mubr.f32.mxu0 0.0
      %699 = vmatmul.mubr.f32.gmra.mxu0 %v490
      %v700 = vpop.f32.mrf.mxu0
      %v701 = vadd.f32 %v439, %v700
      %v702 = vpop.f32.mrf.mxu0
      %v703 = vadd.f32 %v443, %v702
      %704 = vmatprep.mubr.f32.mxu0 0.0
      %705 = vmatmul.mubr.f32.gmra.mxu0 %v493
      %v706 = vpop.f32.mrf.mxu0
      %v707 = vadd.f32 %v439, %v706
      %v708 = vpop.f32.mrf.mxu0
      %v709 = vadd.f32 %v443, %v708
      %710 = vmatprep.mubr.f32.mxu0 0.0
      %711 = vmatmul.mubr.f32.gmra.mxu0 %v496
      %v712 = vpop.f32.mrf.mxu0
      %v713 = vadd.f32 %v439, %v712
      %v714 = vpop.f32.mrf.mxu0
      %v715 = vadd.f32 %v443, %v714
      %716 = vmatprep.mubr.f32.mxu0 0.0
      %717 = vmatmul.mubr.f32.gmra.mxu0 %v499
      %v718 = vpop.f32.mrf.mxu0
      %v719 = vadd.f32 %v439, %v718
      %v720 = vpop.f32.mrf.mxu0
      %v721 = vadd.f32 %v443, %v720
      %722 = vmatprep.mubr.f32.mxu0 0.0
      %723 = vmatmul.mubr.f32.gmra.mxu0 %v502
      %v724 = vpop.f32.mrf.mxu0
      %v725 = vadd.f32 %v439, %v724
      %v726 = vpop.f32.mrf.mxu0
      %v727 = vadd.f32 %v443, %v726
      %728 = vmatprep.mubr.f32.mxu0 0.0
      %729 = vmatmul.mubr.f32.gmra.mxu0 %v505
      %v730 = vpop.f32.mrf.mxu0
      %v731 = vadd.f32 %v439, %v730
      %v732 = vpop.f32.mrf.mxu0
      %v733 = vadd.f32 %v443, %v732
      %734 = vmatprep.mubr.f32.mxu0 0.0
      %735 = vmatmul.mubr.f32.gmra.mxu0 %v508
      %v736 = vpop.f32.mrf.mxu0
      %v737 = vadd.f32 %v439, %v736
      %v738 = vpop.f32.mrf.mxu0
      %v739 = vadd.f32 %v443, %v738
      %740 = vmatprep.mubr.f32.mxu0 0.0
      %741 = vmatmul.mubr.f32.gmra.mxu0 %v511
      %v742 = vpop.f32.mrf.mxu0
      %v743 = vadd.f32 %v439, %v742
      %v744 = vpop.f32.mrf.mxu0
      %v745 = vadd.f32 %v443, %v744
      %746 = vmatprep.mubr.f32.mxu0 0.0
      %747 = vmatmul.mubr.f32.gmra.mxu0 %v514
      %v748 = vpop.f32.mrf.mxu0
      %v749 = vadd.f32 %v439, %v748
      %v750 = vpop.f32.mrf.mxu0
      %v751 = vadd.f32 %v443, %v750
      %752 = vmatprep.mubr.f32.mxu0 0.0
      %753 = vmatmul.mubr.f32.gmra.mxu0 %v517
      %v754 = vpop.f32.mrf.mxu0
      %v755 = vadd.f32 %v439, %v754
      %v756 = vpop.f32.mrf.mxu0
      %v757 = vadd.f32 %v443, %v756
      %758 = vmatprep.mubr.f32.mxu0 0.0
      %759 = vmatmul.mubr.f32.gmra.mxu0 %v520
      %v760 = vpop.f32.mrf.mxu0
      %v761 = vadd.f32 %v439, %v760
      %v762 = vpop.f32.mrf.mxu0
      %v763 = vadd.f32 %v443, %v762
      %764 = vmatprep.mubr.f32.mxu0 0.0
      %765 = vmatmul.mubr.f32.gmra.mxu0 %v523
      %v766 = vpop.f32.mrf.mxu0
      %v767 = vadd.f32 %v439, %v766
      %v768 = vpop.f32.mrf.mxu0
      %v769 = vadd.f32 %v443, %v768
      %770 = vmatprep.mubr.f32.mxu0 0.0
      %771 = vmatmul.mubr.f32.gmra.mxu0 %v526
      %v772 = vpop.f32.mrf.mxu0
      %v773 = vadd.f32 %v439, %v772
      %v774 = vpop.f32.mrf.mxu0
      %v775 = vadd.f32 %v443, %v774
      %776 = vmatprep.mubr.f32.mxu0 0.0
      %777 = vmatmul.mubr.f32.gmra.mxu0 %v529
      %v778 = vpop.f32.mrf.mxu0
      %v779 = vadd.f32 %v439, %v778
      %v780 = vpop.f32.mrf.mxu0
      %v781 = vadd.f32 %v443, %v780
      %782 = vmatprep.mubr.f32.mxu0 0.0
      %783 = vmatmul.mubr.f32.gmra.mxu0 %v532
      %v784 = vpop.f32.mrf.mxu0
      %v785 = vadd.f32 %v439, %v784
      %v786 = vpop.f32.mrf.mxu0
      %v787 = vadd.f32 %v443, %v786
      %788 = vmatprep.mubr.f32.mxu0 0.0
      %789 = vmatmul.mubr.f32.gmra.mxu0 %v535
      %v790 = vpop.f32.mrf.mxu0
      %v791 = vadd.f32 %v439, %v790
      %v792 = vpop.f32.mrf.mxu0
      %v793 = vadd.f32 %v443, %v792
      %794 = vmatprep.mubr.f32.mxu0 0.0
      %795 = vmatmul.mubr.f32.gmra.mxu0 %v538
      %v796 = vpop.f32.mrf.mxu0
      %v797 = vadd.f32 %v439, %v796
      %v798 = vpop.f32.mrf.mxu0
      %v799 = vadd.f32 %v443, %v798
      %800 = vmatprep.mubr.f32.mxu0 0.0
      %801 = vmatmul.mubr.f32.gmra.mxu0 %v541
      %v802 = vpop.f32.mrf.mxu0
      %v803 = vadd.f32 %v439, %v802
      %v804 = vpop.f32.mrf.mxu0
      %v805 = vadd.f32 %v443, %v804
      %806 = vdwg.mxu0
      %v807 = vmax.f32 %v617, 0.0
      %v808 = vmax.f32 %v623, 0.0
      %v809 = vmax.f32 %v629, 0.0
      %v810 = vmax.f32 %v635, 0.0
      %v811 = vmax.f32 %v641, 0.0
      %v812 = vmax.f32 %v647, 0.0
      %v813 = vmax.f32 %v653, 0.0
      %v814 = vmax.f32 %v659, 0.0
      %v815 = vmax.f32 %v665, 0.0
      %v816 = vmax.f32 %v671, 0.0
      %v817 = vmax.f32 %v677, 0.0
      %v818 = vmax.f32 %v683, 0.0
      %v819 = vmax.f32 %v689, 0.0
      %v820 = vmax.f32 %v695, 0.0
      %v821 = vmax.f32 %v701, 0.0
      %v822 = vmax.f32 %v707, 0.0
      %v823 = vmax.f32 %v713, 0.0
      %v824 = vmax.f32 %v719, 0.0
      %v825 = vmax.f32 %v725, 0.0
      %v826 = vmax.f32 %v731, 0.0
      %v827 = vmax.f32 %v737, 0.0
      %v828 = vmax.f32 %v743, 0.0
      %v829 = vmax.f32 %v749, 0.0
      %v830 = vmax.f32 %v755, 0.0
      %v831 = vmax.f32 %v761, 0.0
      %v832 = vmax.f32 %v767, 0.0
      %v833 = vmax.f32 %v773, 0.0
      %v834 = vmax.f32 %v779, 0.0
      %v835 = vmax.f32 %v785, 0.0
      %v836 = vmax.f32 %v791, 0.0
      %v837 = vmax.f32 %v797, 0.0
      %v838 = vmax.f32 %v803, 0.0
      %v839 = vld [vmem:[%s3] sm:$0xff]
      %v840 = vld [vmem:[%s3 + $0x8] sm:$0xff]
      %v841 = vld [vmem:[%s3 + $0x10] sm:$0xff]
      %v842 = vld [vmem:[%s3 + $0x18] sm:$0xff]
      %v843 = vld [vmem:[%s3 + $0x20] sm:$0xff]
      %v844 = vld [vmem:[%s3 + $0x28] sm:$0xff]
      %v845 = vld [vmem:[%s3 + $0x30] sm:$0xff]
      %v846 = vld [vmem:[%s3 + $0x38] sm:$0xff]
      %v847 = vld [vmem:[%s3 + $0x40] sm:$0xff]
      %v848 = vld [vmem:[%s3 + $0x48] sm:$0xff]
      %v849 = vld [vmem:[%s3 + $0x50] sm:$0xff]
      %v850 = vld [vmem:[%s3 + $0x58] sm:$0xff]
      %v851 = vld [vmem:[%s3 + $0x60] sm:$0xff]
      %v852 = vld [vmem:[%s3 + $0x68] sm:$0xff]
      %v853 = vld [vmem:[%s3 + $0x70] sm:$0xff]
      %v854 = vld [vmem:[%s3 + $0x78] sm:$0xff]
      %v855 = vld [vmem:[%s4] sm:$0x1]
      %v857 = vlaneseq
      %v858 = vshrl.u32 %v857, 7
      %v859 = vsub.s32 0, %v858
      %v860 = vrot.slane %v855, %v859
      %862 = vmatprep.subr.mxu0 0.0
      %863 = vmatpush1.msra.mxu0 %v854
      %864 = vmatprep.subr.mxu0 0.0
      %865 = vmatpush1.msra.mxu0 %v853
      %866 = vmatprep.subr.mxu0 0.0
      %867 = vmatpush1.msra.mxu0 %v852
      %868 = vmatprep.subr.mxu0 0.0
      %869 = vmatpush1.msra.mxu0 %v851
      %870 = vmatprep.subr.mxu0 0.0
      %871 = vmatpush1.msra.mxu0 %v850
      %872 = vmatprep.subr.mxu0 0.0
      %873 = vmatpush1.msra.mxu0 %v849
      %874 = vmatprep.subr.mxu0 0.0
      %875 = vmatpush1.msra.mxu0 %v848
      %876 = vmatprep.subr.mxu0 0.0
      %877 = vmatpush1.msra.mxu0 %v847
      %878 = vmatprep.subr.mxu0 0.0
      %879 = vmatpush1.msra.mxu0 %v846
      %880 = vmatprep.subr.mxu0 0.0
      %881 = vmatpush1.msra.mxu0 %v845
      %882 = vmatprep.subr.mxu0 0.0
      %883 = vmatpush1.msra.mxu0 %v844
      %884 = vmatprep.subr.mxu0 0.0
      %885 = vmatpush1.msra.mxu0 %v843
      %886 = vmatprep.subr.mxu0 0.0
      %887 = vmatpush1.msra.mxu0 %v842
      %888 = vmatprep.subr.mxu0 0.0
      %889 = vmatpush1.msra.mxu0 %v841
      %890 = vmatprep.subr.mxu0 0.0
      %891 = vmatpush1.msra.mxu0 %v840
      %892 = vmatprep.subr.mxu0 0.0
      %893 = vmatpush1.msra.mxu0 %v839
      %894 = vmatprep.subr.mxu0 0.0
      %895 = vmatpush2.msra.mxu0 0.0
      %896 = vmatprep.subr.mxu0 0.0
      %897 = vmatpush2.msra.mxu0 0.0
      %898 = vmatprep.subr.mxu0 0.0
      %899 = vmatpush2.msra.mxu0 0.0
      %900 = vmatprep.subr.mxu0 0.0
      %901 = vmatpush2.msra.mxu0 0.0
      %902 = vmatprep.subr.mxu0 0.0
      %903 = vmatpush2.msra.mxu0 0.0
      %904 = vmatprep.subr.mxu0 0.0
      %905 = vmatpush2.msra.mxu0 0.0
      %906 = vmatprep.subr.mxu0 0.0
      %907 = vmatpush2.msra.mxu0 0.0
      %908 = vmatprep.subr.mxu0 0.0
      %909 = vmatpush2.msra.mxu0 0.0
      %910 = vmatprep.subr.mxu0 0.0
      %911 = vmatpush2.msra.mxu0 0.0
      %912 = vmatprep.subr.mxu0 0.0
      %913 = vmatpush2.msra.mxu0 0.0
      %914 = vmatprep.subr.mxu0 0.0
      %915 = vmatpush2.msra.mxu0 0.0
      %916 = vmatprep.subr.mxu0 0.0
      %917 = vmatpush2.msra.mxu0 0.0
      %918 = vmatprep.subr.mxu0 0.0
      %919 = vmatpush2.msra.mxu0 0.0
      %920 = vmatprep.subr.mxu0 0.0
      %921 = vmatpush2.msra.mxu0 0.0
      %922 = vmatprep.subr.mxu0 0.0
      %923 = vmatpush2.msra.mxu0 0.0
      %924 = vmatprep.subr.mxu0 0.0
      %925 = vmatpush2.msra.mxu0 0.0
      %926 = vmatprep.mubr.f32.mxu0 0.0
      %927 = vmatmul.mubr.f32.gmra.mxu0 %v807
      %v928 = vpop.f32.mrf.mxu0
      %v929 = vadd.f32 %v860, %v928
      %v930 = vpop.f32.mrf.mxu0
      %931 = vmatprep.mubr.f32.mxu0 0.0
      %932 = vmatmul.mubr.f32.gmra.mxu0 %v808
      %v933 = vpop.f32.mrf.mxu0
      %v934 = vadd.f32 %v860, %v933
      %v935 = vpop.f32.mrf.mxu0
      %936 = vmatprep.mubr.f32.mxu0 0.0
      %937 = vmatmul.mubr.f32.gmra.mxu0 %v809
      %v938 = vpop.f32.mrf.mxu0
      %v939 = vadd.f32 %v860, %v938
      %v940 = vpop.f32.mrf.mxu0
      %941 = vmatprep.mubr.f32.mxu0 0.0
      %942 = vmatmul.mubr.f32.gmra.mxu0 %v810
      %v943 = vpop.f32.mrf.mxu0
      %v944 = vadd.f32 %v860, %v943
      %v945 = vpop.f32.mrf.mxu0
      %946 = vmatprep.mubr.f32.mxu0 0.0
      %947 = vmatmul.mubr.f32.gmra.mxu0 %v811
      %v948 = vpop.f32.mrf.mxu0
      %v949 = vadd.f32 %v860, %v948
      %v950 = vpop.f32.mrf.mxu0
      %951 = vmatprep.mubr.f32.mxu0 0.0
      %952 = vmatmul.mubr.f32.gmra.mxu0 %v812
      %v953 = vpop.f32.mrf.mxu0
      %v954 = vadd.f32 %v860, %v953
      %v955 = vpop.f32.mrf.mxu0
      %956 = vmatprep.mubr.f32.mxu0 0.0
      %957 = vmatmul.mubr.f32.gmra.mxu0 %v813
      %v958 = vpop.f32.mrf.mxu0
      %v959 = vadd.f32 %v860, %v958
      %v960 = vpop.f32.mrf.mxu0
      %961 = vmatprep.mubr.f32.mxu0 0.0
      %962 = vmatmul.mubr.f32.gmra.mxu0 %v814
      %v963 = vpop.f32.mrf.mxu0
      %v964 = vadd.f32 %v860, %v963
      %v965 = vpop.f32.mrf.mxu0
      %966 = vmatprep.mubr.f32.mxu0 0.0
      %967 = vmatmul.mubr.f32.gmra.mxu0 %v815
      %v968 = vpop.f32.mrf.mxu0
      %v969 = vadd.f32 %v860, %v968
      %v970 = vpop.f32.mrf.mxu0
      %971 = vmatprep.mubr.f32.mxu0 0.0
      %972 = vmatmul.mubr.f32.gmra.mxu0 %v816
      %v973 = vpop.f32.mrf.mxu0
      %v974 = vadd.f32 %v860, %v973
      %v975 = vpop.f32.mrf.mxu0
      %976 = vmatprep.mubr.f32.mxu0 0.0
      %977 = vmatmul.mubr.f32.gmra.mxu0 %v817
      %v978 = vpop.f32.mrf.mxu0
      %v979 = vadd.f32 %v860, %v978
      %v980 = vpop.f32.mrf.mxu0
      %981 = vmatprep.mubr.f32.mxu0 0.0
      %982 = vmatmul.mubr.f32.gmra.mxu0 %v818
      %v983 = vpop.f32.mrf.mxu0
      %v984 = vadd.f32 %v860, %v983
      %v985 = vpop.f32.mrf.mxu0
      %986 = vmatprep.mubr.f32.mxu0 0.0
      %987 = vmatmul.mubr.f32.gmra.mxu0 %v819
      %v988 = vpop.f32.mrf.mxu0
      %v989 = vadd.f32 %v860, %v988
      %v990 = vpop.f32.mrf.mxu0
      %991 = vmatprep.mubr.f32.mxu0 0.0
      %992 = vmatmul.mubr.f32.gmra.mxu0 %v820
      %v993 = vpop.f32.mrf.mxu0
      %v994 = vadd.f32 %v860, %v993
      %v995 = vpop.f32.mrf.mxu0
      %996 = vmatprep.mubr.f32.mxu0 0.0
      %997 = vmatmul.mubr.f32.gmra.mxu0 %v821
      %v998 = vpop.f32.mrf.mxu0
      %v999 = vadd.f32 %v860, %v998
      %v1000 = vpop.f32.mrf.mxu0
      %1001 = vmatprep.mubr.f32.mxu0 0.0
      %1002 = vmatmul.mubr.f32.gmra.mxu0 %v822
      %v1003 = vpop.f32.mrf.mxu0
      %v1004 = vadd.f32 %v860, %v1003
      %v1005 = vpop.f32.mrf.mxu0
      %1006 = vmatprep.mubr.f32.mxu0 0.0
      %1007 = vmatmul.mubr.f32.gmra.mxu0 %v823
      %v1008 = vpop.f32.mrf.mxu0
      %v1009 = vadd.f32 %v860, %v1008
      %v1010 = vpop.f32.mrf.mxu0
      %1011 = vmatprep.mubr.f32.mxu0 0.0
      %1012 = vmatmul.mubr.f32.gmra.mxu0 %v824
      %v1013 = vpop.f32.mrf.mxu0
      %v1014 = vadd.f32 %v860, %v1013
      %v1015 = vpop.f32.mrf.mxu0
      %1016 = vmatprep.mubr.f32.mxu0 0.0
      %1017 = vmatmul.mubr.f32.gmra.mxu0 %v825
      %v1018 = vpop.f32.mrf.mxu0
      %v1019 = vadd.f32 %v860, %v1018
      %v1020 = vpop.f32.mrf.mxu0
      %1021 = vmatprep.mubr.f32.mxu0 0.0
      %1022 = vmatmul.mubr.f32.gmra.mxu0 %v826
      %v1023 = vpop.f32.mrf.mxu0
      %v1024 = vadd.f32 %v860, %v1023
      %v1025 = vpop.f32.mrf.mxu0
      %1026 = vmatprep.mubr.f32.mxu0 0.0
      %1027 = vmatmul.mubr.f32.gmra.mxu0 %v827
      %v1028 = vpop.f32.mrf.mxu0
      %v1029 = vadd.f32 %v860, %v1028
      %v1030 = vpop.f32.mrf.mxu0
      %1031 = vmatprep.mubr.f32.mxu0 0.0
      %1032 = vmatmul.mubr.f32.gmra.mxu0 %v828
      %v1033 = vpop.f32.mrf.mxu0
      %v1034 = vadd.f32 %v860, %v1033
      %v1035 = vpop.f32.mrf.mxu0
      %1036 = vmatprep.mubr.f32.mxu0 0.0
      %1037 = vmatmul.mubr.f32.gmra.mxu0 %v829
      %v1038 = vpop.f32.mrf.mxu0
      %v1039 = vadd.f32 %v860, %v1038
      %v1040 = vpop.f32.mrf.mxu0
      %1041 = vmatprep.mubr.f32.mxu0 0.0
      %1042 = vmatmul.mubr.f32.gmra.mxu0 %v830
      %v1043 = vpop.f32.mrf.mxu0
      %v1044 = vadd.f32 %v860, %v1043
      %v1045 = vpop.f32.mrf.mxu0
      %1046 = vmatprep.mubr.f32.mxu0 0.0
      %1047 = vmatmul.mubr.f32.gmra.mxu0 %v831
      %v1048 = vpop.f32.mrf.mxu0
      %v1049 = vadd.f32 %v860, %v1048
      %v1050 = vpop.f32.mrf.mxu0
      %1051 = vmatprep.mubr.f32.mxu0 0.0
      %1052 = vmatmul.mubr.f32.gmra.mxu0 %v832
      %v1053 = vpop.f32.mrf.mxu0
      %v1054 = vadd.f32 %v860, %v1053
      %v1055 = vpop.f32.mrf.mxu0
      %1056 = vmatprep.mubr.f32.mxu0 0.0
      %1057 = vmatmul.mubr.f32.gmra.mxu0 %v833
      %v1058 = vpop.f32.mrf.mxu0
      %v1059 = vadd.f32 %v860, %v1058
      %v1060 = vpop.f32.mrf.mxu0
      %1061 = vmatprep.mubr.f32.mxu0 0.0
      %1062 = vmatmul.mubr.f32.gmra.mxu0 %v834
      %v1063 = vpop.f32.mrf.mxu0
      %v1064 = vadd.f32 %v860, %v1063
      %v1065 = vpop.f32.mrf.mxu0
      %1066 = vmatprep.mubr.f32.mxu0 0.0
      %1067 = vmatmul.mubr.f32.gmra.mxu0 %v835
      %v1068 = vpop.f32.mrf.mxu0
      %v1069 = vadd.f32 %v860, %v1068
      %v1070 = vpop.f32.mrf.mxu0
      %1071 = vmatprep.mubr.f32.mxu0 0.0
      %1072 = vmatmul.mubr.f32.gmra.mxu0 %v836
      %v1073 = vpop.f32.mrf.mxu0
      %v1074 = vadd.f32 %v860, %v1073
      %v1075 = vpop.f32.mrf.mxu0
      %1076 = vmatprep.mubr.f32.mxu0 0.0
      %1077 = vmatmul.mubr.f32.gmra.mxu0 %v837
      %v1078 = vpop.f32.mrf.mxu0
      %v1079 = vadd.f32 %v860, %v1078
      %v1080 = vpop.f32.mrf.mxu0
      %1081 = vmatprep.mubr.f32.mxu0 0.0
      %1082 = vmatmul.mubr.f32.gmra.mxu0 %v838
      %v1083 = vpop.f32.mrf.mxu0
      %v1084 = vadd.f32 %v860, %v1083
      %v1085 = vpop.f32.mrf.mxu0
      %1086 = vdwg.mxu0
      %v1087 = vmax.f32 %v929, 0.0
      %v1088 = vmax.f32 %v934, 0.0
      %v1089 = vmax.f32 %v939, 0.0
      %v1090 = vmax.f32 %v944, 0.0
      %v1091 = vmax.f32 %v949, 0.0
      %v1092 = vmax.f32 %v954, 0.0
      %v1093 = vmax.f32 %v959, 0.0
      %v1094 = vmax.f32 %v964, 0.0
      %v1095 = vmax.f32 %v969, 0.0
      %v1096 = vmax.f32 %v974, 0.0
      %v1097 = vmax.f32 %v979, 0.0
      %v1098 = vmax.f32 %v984, 0.0
      %v1099 = vmax.f32 %v989, 0.0
      %v1100 = vmax.f32 %v994, 0.0
      %v1101 = vmax.f32 %v999, 0.0
      %v1102 = vmax.f32 %v1004, 0.0
      %v1103 = vmax.f32 %v1009, 0.0
      %v1104 = vmax.f32 %v1014, 0.0
      %v1105 = vmax.f32 %v1019, 0.0
      %v1106 = vmax.f32 %v1024, 0.0
      %v1107 = vmax.f32 %v1029, 0.0
      %v1108 = vmax.f32 %v1034, 0.0
      %v1109 = vmax.f32 %v1039, 0.0
      %v1110 = vmax.f32 %v1044, 0.0
      %v1111 = vmax.f32 %v1049, 0.0
      %v1112 = vmax.f32 %v1054, 0.0
      %v1113 = vmax.f32 %v1059, 0.0
      %v1114 = vmax.f32 %v1064, 0.0
      %v1115 = vmax.f32 %v1069, 0.0
      %v1116 = vmax.f32 %v1074, 0.0
      %v1117 = vmax.f32 %v1079, 0.0
      %v1118 = vmax.f32 %v1084, 0.0
      %v1119 = vld [vmem:[%s5] sm:$0xff]
      %v1120 = vld [vmem:[%s5 + $0x8] sm:$0xff]
      %v1121 = vld [vmem:[%s5 + $0x10] sm:$0xff]
      %v1122 = vld [vmem:[%s5 + $0x18] sm:$0xff]
      %v1123 = vld [vmem:[%s5 + $0x20] sm:$0xff]
      %v1124 = vld [vmem:[%s5 + $0x28] sm:$0xff]
      %v1125 = vld [vmem:[%s5 + $0x30] sm:$0xff]
      %v1126 = vld [vmem:[%s5 + $0x38] sm:$0xff]
      %v1127 = vld [vmem:[%s6] sm:$0x1]
      %v1129 = vlaneseq
      %v1130 = vshrl.u32 %v1129, 7
      %v1131 = vsub.s32 0, %v1130
      %v1132 = vrot.slane %v1127, %v1131
      %vm1134 = vcmask 523264
      %v1136 = vsel %vm1134, %v1087, 0
      %v1139 = vsel %vm1134, %v1088, 0
      %v1142 = vsel %vm1134, %v1089, 0
      %v1145 = vsel %vm1134, %v1090, 0
      %v1148 = vsel %vm1134, %v1091, 0
      %v1151 = vsel %vm1134, %v1092, 0
      %v1154 = vsel %vm1134, %v1093, 0
      %v1157 = vsel %vm1134, %v1094, 0
      %v1160 = vsel %vm1134, %v1095, 0
      %v1163 = vsel %vm1134, %v1096, 0
      %v1166 = vsel %vm1134, %v1097, 0
      %v1169 = vsel %vm1134, %v1098, 0
      %v1172 = vsel %vm1134, %v1099, 0
      %v1175 = vsel %vm1134, %v1100, 0
      %v1178 = vsel %vm1134, %v1101, 0
      %v1181 = vsel %vm1134, %v1102, 0
      %v1184 = vsel %vm1134, %v1103, 0
      %v1187 = vsel %vm1134, %v1104, 0
      %v1190 = vsel %vm1134, %v1105, 0
      %v1193 = vsel %vm1134, %v1106, 0
      %v1196 = vsel %vm1134, %v1107, 0
      %v1199 = vsel %vm1134, %v1108, 0
      %v1202 = vsel %vm1134, %v1109, 0
      %v1205 = vsel %vm1134, %v1110, 0
      %v1208 = vsel %vm1134, %v1111, 0
      %v1211 = vsel %vm1134, %v1112, 0
      %v1214 = vsel %vm1134, %v1113, 0
      %v1217 = vsel %vm1134, %v1114, 0
      %v1220 = vsel %vm1134, %v1115, 0
      %v1223 = vsel %vm1134, %v1116, 0
      %v1226 = vsel %vm1134, %v1117, 0
      %v1229 = vsel %vm1134, %v1118, 0
      %1231 = vmatprep.subr.mxu0 0.0
      %1232 = vmatpush1.msra.mxu0 0.0
      %1233 = vmatprep.subr.mxu0 0.0
      %1234 = vmatpush1.msra.mxu0 0.0
      %1235 = vmatprep.subr.mxu0 0.0
      %1236 = vmatpush1.msra.mxu0 0.0
      %1237 = vmatprep.subr.mxu0 0.0
      %1238 = vmatpush1.msra.mxu0 0.0
      %1239 = vmatprep.subr.mxu0 0.0
      %1240 = vmatpush1.msra.mxu0 0.0
      %1241 = vmatprep.subr.mxu0 0.0
      %1242 = vmatpush1.msra.mxu0 0.0
      %1243 = vmatprep.subr.mxu0 0.0
      %1244 = vmatpush1.msra.mxu0 0.0
      %1245 = vmatprep.subr.mxu0 0.0
      %1246 = vmatpush1.msra.mxu0 0.0
      %1247 = vmatprep.subr.mxu0 0.0
      %1248 = vmatpush1.msra.mxu0 %v1126
      %1249 = vmatprep.subr.mxu0 0.0
      %1250 = vmatpush1.msra.mxu0 %v1125
      %1251 = vmatprep.subr.mxu0 0.0
      %1252 = vmatpush1.msra.mxu0 %v1124
      %1253 = vmatprep.subr.mxu0 0.0
      %1254 = vmatpush1.msra.mxu0 %v1123
      %1255 = vmatprep.subr.mxu0 0.0
      %1256 = vmatpush1.msra.mxu0 %v1122
      %1257 = vmatprep.subr.mxu0 0.0
      %1258 = vmatpush1.msra.mxu0 %v1121
      %1259 = vmatprep.subr.mxu0 0.0
      %1260 = vmatpush1.msra.mxu0 %v1120
      %1261 = vmatprep.subr.mxu0 0.0
      %1262 = vmatpush1.msra.mxu0 %v1119
      %1263 = vmatprep.subr.mxu0 0.0
      %1264 = vmatpush2.msra.mxu0 0.0
      %1265 = vmatprep.subr.mxu0 0.0
      %1266 = vmatpush2.msra.mxu0 0.0
      %1267 = vmatprep.subr.mxu0 0.0
      %1268 = vmatpush2.msra.mxu0 0.0
      %1269 = vmatprep.subr.mxu0 0.0
      %1270 = vmatpush2.msra.mxu0 0.0
      %1271 = vmatprep.subr.mxu0 0.0
      %1272 = vmatpush2.msra.mxu0 0.0
      %1273 = vmatprep.subr.mxu0 0.0
      %1274 = vmatpush2.msra.mxu0 0.0
      %1275 = vmatprep.subr.mxu0 0.0
      %1276 = vmatpush2.msra.mxu0 0.0
      %1277 = vmatprep.subr.mxu0 0.0
      %1278 = vmatpush2.msra.mxu0 0.0
      %1279 = vmatprep.subr.mxu0 0.0
      %1280 = vmatpush2.msra.mxu0 0.0
      %1281 = vmatprep.subr.mxu0 0.0
      %1282 = vmatpush2.msra.mxu0 0.0
      %1283 = vmatprep.subr.mxu0 0.0
      %1284 = vmatpush2.msra.mxu0 0.0
      %1285 = vmatprep.subr.mxu0 0.0
      %1286 = vmatpush2.msra.mxu0 0.0
      %1287 = vmatprep.subr.mxu0 0.0
      %1288 = vmatpush2.msra.mxu0 0.0
      %1289 = vmatprep.subr.mxu0 0.0
      %1290 = vmatpush2.msra.mxu0 0.0
      %1291 = vmatprep.subr.mxu0 0.0
      %1292 = vmatpush2.msra.mxu0 0.0
      %1293 = vmatprep.subr.mxu0 0.0
      %1294 = vmatpush2.msra.mxu0 0.0
      %1295 = vmatprep.mubr.f32.mxu0 0.0
      %1296 = vmatmul.mubr.f32.gmra.mxu0 %v1136
      %v1297 = vpop.f32.mrf.mxu0
      %v1298 = vadd.f32 %v1132, %v1297
      %v1299 = vpop.f32.mrf.mxu0
      %1300 = vmatprep.mubr.f32.mxu0 0.0
      %1301 = vmatmul.mubr.f32.gmra.mxu0 %v1139
      %v1302 = vpop.f32.mrf.mxu0
      %v1303 = vadd.f32 %v1132, %v1302
      %v1304 = vpop.f32.mrf.mxu0
      %1305 = vmatprep.mubr.f32.mxu0 0.0
      %1306 = vmatmul.mubr.f32.gmra.mxu0 %v1142
      %v1307 = vpop.f32.mrf.mxu0
      %v1308 = vadd.f32 %v1132, %v1307
      %v1309 = vpop.f32.mrf.mxu0
      %1310 = vmatprep.mubr.f32.mxu0 0.0
      %1311 = vmatmul.mubr.f32.gmra.mxu0 %v1145
      %v1312 = vpop.f32.mrf.mxu0
      %v1313 = vadd.f32 %v1132, %v1312
      %v1314 = vpop.f32.mrf.mxu0
      %1315 = vmatprep.mubr.f32.mxu0 0.0
      %1316 = vmatmul.mubr.f32.gmra.mxu0 %v1148
      %v1317 = vpop.f32.mrf.mxu0
      %v1318 = vadd.f32 %v1132, %v1317
      %v1319 = vpop.f32.mrf.mxu0
      %1320 = vmatprep.mubr.f32.mxu0 0.0
      %1321 = vmatmul.mubr.f32.gmra.mxu0 %v1151
      %v1322 = vpop.f32.mrf.mxu0
      %v1323 = vadd.f32 %v1132, %v1322
      %v1324 = vpop.f32.mrf.mxu0
      %1325 = vmatprep.mubr.f32.mxu0 0.0
      %1326 = vmatmul.mubr.f32.gmra.mxu0 %v1154
      %v1327 = vpop.f32.mrf.mxu0
      %v1328 = vadd.f32 %v1132, %v1327
      %v1329 = vpop.f32.mrf.mxu0
      %1330 = vmatprep.mubr.f32.mxu0 0.0
      %1331 = vmatmul.mubr.f32.gmra.mxu0 %v1157
      %v1332 = vpop.f32.mrf.mxu0
      %v1333 = vadd.f32 %v1132, %v1332
      %v1334 = vpop.f32.mrf.mxu0
      %1335 = vmatprep.mubr.f32.mxu0 0.0
      %1336 = vmatmul.mubr.f32.gmra.mxu0 %v1160
      %v1337 = vpop.f32.mrf.mxu0
      %v1338 = vadd.f32 %v1132, %v1337
      %v1339 = vpop.f32.mrf.mxu0
      %1340 = vmatprep.mubr.f32.mxu0 0.0
      %1341 = vmatmul.mubr.f32.gmra.mxu0 %v1163
      %v1342 = vpop.f32.mrf.mxu0
      %v1343 = vadd.f32 %v1132, %v1342
      %v1344 = vpop.f32.mrf.mxu0
      %1345 = vmatprep.mubr.f32.mxu0 0.0
      %1346 = vmatmul.mubr.f32.gmra.mxu0 %v1166
      %v1347 = vpop.f32.mrf.mxu0
      %v1348 = vadd.f32 %v1132, %v1347
      %v1349 = vpop.f32.mrf.mxu0
      %1350 = vmatprep.mubr.f32.mxu0 0.0
      %1351 = vmatmul.mubr.f32.gmra.mxu0 %v1169
      %v1352 = vpop.f32.mrf.mxu0
      %v1353 = vadd.f32 %v1132, %v1352
      %v1354 = vpop.f32.mrf.mxu0
      %1355 = vmatprep.mubr.f32.mxu0 0.0
      %1356 = vmatmul.mubr.f32.gmra.mxu0 %v1172
      %v1357 = vpop.f32.mrf.mxu0
      %v1358 = vadd.f32 %v1132, %v1357
      %v1359 = vpop.f32.mrf.mxu0
      %1360 = vmatprep.mubr.f32.mxu0 0.0
      %1361 = vmatmul.mubr.f32.gmra.mxu0 %v1175
      %v1362 = vpop.f32.mrf.mxu0
      %v1363 = vadd.f32 %v1132, %v1362
      %v1364 = vpop.f32.mrf.mxu0
      %1365 = vmatprep.mubr.f32.mxu0 0.0
      %1366 = vmatmul.mubr.f32.gmra.mxu0 %v1178
      %v1367 = vpop.f32.mrf.mxu0
      %v1368 = vadd.f32 %v1132, %v1367
      %v1369 = vpop.f32.mrf.mxu0
      %1370 = vmatprep.mubr.f32.mxu0 0.0
      %1371 = vmatmul.mubr.f32.gmra.mxu0 %v1181
      %v1372 = vpop.f32.mrf.mxu0
      %v1373 = vadd.f32 %v1132, %v1372
      %v1374 = vpop.f32.mrf.mxu0
      %1375 = vmatprep.mubr.f32.mxu0 0.0
      %1376 = vmatmul.mubr.f32.gmra.mxu0 %v1184
      %v1377 = vpop.f32.mrf.mxu0
      %v1378 = vadd.f32 %v1132, %v1377
      %v1379 = vpop.f32.mrf.mxu0
      %1380 = vmatprep.mubr.f32.mxu0 0.0
      %1381 = vmatmul.mubr.f32.gmra.mxu0 %v1187
      %v1382 = vpop.f32.mrf.mxu0
      %v1383 = vadd.f32 %v1132, %v1382
      %v1384 = vpop.f32.mrf.mxu0
      %1385 = vmatprep.mubr.f32.mxu0 0.0
      %1386 = vmatmul.mubr.f32.gmra.mxu0 %v1190
      %v1387 = vpop.f32.mrf.mxu0
      %v1388 = vadd.f32 %v1132, %v1387
      %v1389 = vpop.f32.mrf.mxu0
      %1390 = vmatprep.mubr.f32.mxu0 0.0
      %1391 = vmatmul.mubr.f32.gmra.mxu0 %v1193
      %v1392 = vpop.f32.mrf.mxu0
      %v1393 = vadd.f32 %v1132, %v1392
      %v1394 = vpop.f32.mrf.mxu0
      %1395 = vmatprep.mubr.f32.mxu0 0.0
      %1396 = vmatmul.mubr.f32.gmra.mxu0 %v1196
      %v1397 = vpop.f32.mrf.mxu0
      %v1398 = vadd.f32 %v1132, %v1397
      %v1399 = vpop.f32.mrf.mxu0
      %1400 = vmatprep.mubr.f32.mxu0 0.0
      %1401 = vmatmul.mubr.f32.gmra.mxu0 %v1199
      %v1402 = vpop.f32.mrf.mxu0
      %v1403 = vadd.f32 %v1132, %v1402
      %v1404 = vpop.f32.mrf.mxu0
      %1405 = vmatprep.mubr.f32.mxu0 0.0
      %1406 = vmatmul.mubr.f32.gmra.mxu0 %v1202
      %v1407 = vpop.f32.mrf.mxu0
      %v1408 = vadd.f32 %v1132, %v1407
      %v1409 = vpop.f32.mrf.mxu0
      %1410 = vmatprep.mubr.f32.mxu0 0.0
      %1411 = vmatmul.mubr.f32.gmra.mxu0 %v1205
      %v1412 = vpop.f32.mrf.mxu0
      %v1413 = vadd.f32 %v1132, %v1412
      %v1414 = vpop.f32.mrf.mxu0
      %1415 = vmatprep.mubr.f32.mxu0 0.0
      %1416 = vmatmul.mubr.f32.gmra.mxu0 %v1208
      %v1417 = vpop.f32.mrf.mxu0
      %v1418 = vadd.f32 %v1132, %v1417
      %v1419 = vpop.f32.mrf.mxu0
      %1420 = vmatprep.mubr.f32.mxu0 0.0
      %1421 = vmatmul.mubr.f32.gmra.mxu0 %v1211
      %v1422 = vpop.f32.mrf.mxu0
      %v1423 = vadd.f32 %v1132, %v1422
      %v1424 = vpop.f32.mrf.mxu0
      %1425 = vmatprep.mubr.f32.mxu0 0.0
      %1426 = vmatmul.mubr.f32.gmra.mxu0 %v1214
      %v1427 = vpop.f32.mrf.mxu0
      %v1428 = vadd.f32 %v1132, %v1427
      %v1429 = vpop.f32.mrf.mxu0
      %1430 = vmatprep.mubr.f32.mxu0 0.0
      %1431 = vmatmul.mubr.f32.gmra.mxu0 %v1217
      %v1432 = vpop.f32.mrf.mxu0
      %v1433 = vadd.f32 %v1132, %v1432
      %v1434 = vpop.f32.mrf.mxu0
      %1435 = vmatprep.mubr.f32.mxu0 0.0
      %1436 = vmatmul.mubr.f32.gmra.mxu0 %v1220
      %v1437 = vpop.f32.mrf.mxu0
      %v1438 = vadd.f32 %v1132, %v1437
      %v1439 = vpop.f32.mrf.mxu0
      %1440 = vmatprep.mubr.f32.mxu0 0.0
      %1441 = vmatmul.mubr.f32.gmra.mxu0 %v1223
      %v1442 = vpop.f32.mrf.mxu0
      %v1443 = vadd.f32 %v1132, %v1442
      %v1444 = vpop.f32.mrf.mxu0
      %1445 = vmatprep.mubr.f32.mxu0 0.0
      %1446 = vmatmul.mubr.f32.gmra.mxu0 %v1226
      %v1447 = vpop.f32.mrf.mxu0
      %v1448 = vadd.f32 %v1132, %v1447
      %v1449 = vpop.f32.mrf.mxu0
      %1450 = vmatprep.mubr.f32.mxu0 0.0
      %1451 = vmatmul.mubr.f32.gmra.mxu0 %v1229
      %v1452 = vpop.f32.mrf.mxu0
      %v1453 = vadd.f32 %v1132, %v1452
      %v1454 = vpop.f32.mrf.mxu0
      %1455 = vdwg.mxu0
      %v1456 = vmax.f32 %v1298, 0.0
      %v1457 = vmax.f32 %v1303, 0.0
      %v1458 = vmax.f32 %v1308, 0.0
      %v1459 = vmax.f32 %v1313, 0.0
      %v1460 = vmax.f32 %v1318, 0.0
      %v1461 = vmax.f32 %v1323, 0.0
      %v1462 = vmax.f32 %v1328, 0.0
      %v1463 = vmax.f32 %v1333, 0.0
      %v1464 = vmax.f32 %v1338, 0.0
      %v1465 = vmax.f32 %v1343, 0.0
      %v1466 = vmax.f32 %v1348, 0.0
      %v1467 = vmax.f32 %v1353, 0.0
      %v1468 = vmax.f32 %v1358, 0.0
      %v1469 = vmax.f32 %v1363, 0.0
      %v1470 = vmax.f32 %v1368, 0.0
      %v1471 = vmax.f32 %v1373, 0.0
      %v1472 = vmax.f32 %v1378, 0.0
      %v1473 = vmax.f32 %v1383, 0.0
      %v1474 = vmax.f32 %v1388, 0.0
      %v1475 = vmax.f32 %v1393, 0.0
      %v1476 = vmax.f32 %v1398, 0.0
      %v1477 = vmax.f32 %v1403, 0.0
      %v1478 = vmax.f32 %v1408, 0.0
      %v1479 = vmax.f32 %v1413, 0.0
      %v1480 = vmax.f32 %v1418, 0.0
      %v1481 = vmax.f32 %v1423, 0.0
      %v1482 = vmax.f32 %v1428, 0.0
      %v1483 = vmax.f32 %v1433, 0.0
      %v1484 = vmax.f32 %v1438, 0.0
      %v1485 = vmax.f32 %v1443, 0.0
      %v1486 = vmax.f32 %v1448, 0.0
      %v1487 = vmax.f32 %v1453, 0.0
      %v1488 = vld [vmem:[%s7] sm:$0xff]
      %v1489 = vld [vmem:[%s7 + $0x8] sm:$0xff]
      %v1490 = vld [vmem:[%s7 + $0x10] sm:$0xff]
      %v1491 = vld [vmem:[%s7 + $0x18] sm:$0xff]
      %v1492 = vld [vmem:[%s7 + $0x20] sm:$0xff]
      %v1493 = vld [vmem:[%s7 + $0x28] sm:$0xff]
      %v1494 = vld [vmem:[%s7 + $0x30] sm:$0xff]
      %v1495 = vld [vmem:[%s7 + $0x38] sm:$0xff]
      %v1496 = vld [vmem:[%s7 + $0x40] sm:$0xff]
      %v1497 = vld [vmem:[%s7 + $0x48] sm:$0xff]
      %v1498 = vld [vmem:[%s7 + $0x50] sm:$0xff]
      %v1499 = vld [vmem:[%s7 + $0x58] sm:$0x1f]
      %vm1500 = vcmask 760832
      %v1502 = vsel %vm1500, %v1456, 0
      %v1505 = vsel %vm1500, %v1457, 0
      %v1508 = vsel %vm1500, %v1458, 0
      %v1511 = vsel %vm1500, %v1459, 0
      %v1514 = vsel %vm1500, %v1460, 0
      %v1517 = vsel %vm1500, %v1461, 0
      %v1520 = vsel %vm1500, %v1462, 0
      %v1523 = vsel %vm1500, %v1463, 0
      %v1526 = vsel %vm1500, %v1464, 0
      %v1529 = vsel %vm1500, %v1465, 0
      %v1532 = vsel %vm1500, %v1466, 0
      %v1535 = vsel %vm1500, %v1467, 0
      %v1538 = vsel %vm1500, %v1468, 0
      %v1541 = vsel %vm1500, %v1469, 0
      %v1544 = vsel %vm1500, %v1470, 0
      %v1547 = vsel %vm1500, %v1471, 0
      %v1550 = vsel %vm1500, %v1472, 0
      %v1553 = vsel %vm1500, %v1473, 0
      %v1556 = vsel %vm1500, %v1474, 0
      %v1559 = vsel %vm1500, %v1475, 0
      %v1562 = vsel %vm1500, %v1476, 0
      %v1565 = vsel %vm1500, %v1477, 0
      %v1568 = vsel %vm1500, %v1478, 0
      %v1571 = vsel %vm1500, %v1479, 0
      %v1574 = vsel %vm1500, %v1480, 0
      %v1577 = vsel %vm1500, %v1481, 0
      %v1580 = vsel %vm1500, %v1482, 0
      %v1583 = vsel %vm1500, %v1483, 0
      %v1586 = vsel %vm1500, %v1484, 0
      %v1589 = vsel %vm1500, %v1485, 0
      %v1592 = vsel %vm1500, %v1486, 0
      %v1595 = vsel %vm1500, %v1487, 0
      %vm1597 = vcmask 1044480
      %v1599 = vsel %vm1597, %v1499, 0
      %1601 = vmatprep.subr.mxu0 0.0
      %1602 = vmatpush1.msra.mxu0 0.0
      %1603 = vmatprep.subr.mxu0 0.0
      %1604 = vmatpush1.msra.mxu0 0.0
      %1605 = vmatprep.subr.mxu0 0.0
      %1606 = vmatpush1.msra.mxu0 0.0
      %1607 = vmatprep.subr.mxu0 0.0
      %1608 = vmatpush1.msra.mxu0 0.0
      %1609 = vmatprep.subr.mxu0 0.0
      %1610 = vmatpush1.msra.mxu0 %v1599
      %1611 = vmatprep.subr.mxu0 0.0
      %1612 = vmatpush1.msra.mxu0 %v1498
      %1613 = vmatprep.subr.mxu0 0.0
      %1614 = vmatpush1.msra.mxu0 %v1497
      %1615 = vmatprep.subr.mxu0 0.0
      %1616 = vmatpush1.msra.mxu0 %v1496
      %1617 = vmatprep.subr.mxu0 0.0
      %1618 = vmatpush1.msra.mxu0 %v1495
      %1619 = vmatprep.subr.mxu0 0.0
      %1620 = vmatpush1.msra.mxu0 %v1494
      %1621 = vmatprep.subr.mxu0 0.0
      %1622 = vmatpush1.msra.mxu0 %v1493
      %1623 = vmatprep.subr.mxu0 0.0
      %1624 = vmatpush1.msra.mxu0 %v1492
      %1625 = vmatprep.subr.mxu0 0.0
      %1626 = vmatpush1.msra.mxu0 %v1491
      %1627 = vmatprep.subr.mxu0 0.0
      %1628 = vmatpush1.msra.mxu0 %v1490
      %1629 = vmatprep.subr.mxu0 0.0
      %1630 = vmatpush1.msra.mxu0 %v1489
      %1631 = vmatprep.subr.mxu0 0.0
      %1632 = vmatpush1.msra.mxu0 %v1488
      %1633 = vmatprep.subr.mxu0 0.0
      %1634 = vmatpush2.msra.mxu0 0.0
      %1635 = vmatprep.subr.mxu0 0.0
      %1636 = vmatpush2.msra.mxu0 0.0
      %1637 = vmatprep.subr.mxu0 0.0
      %1638 = vmatpush2.msra.mxu0 0.0
      %1639 = vmatprep.subr.mxu0 0.0
      %1640 = vmatpush2.msra.mxu0 0.0
      %1641 = vmatprep.subr.mxu0 0.0
      %1642 = vmatpush2.msra.mxu0 0.0
      %1643 = vmatprep.subr.mxu0 0.0
      %1644 = vmatpush2.msra.mxu0 0.0
      %1645 = vmatprep.subr.mxu0 0.0
      %1646 = vmatpush2.msra.mxu0 0.0
      %1647 = vmatprep.subr.mxu0 0.0
      %1648 = vmatpush2.msra.mxu0 0.0
      %1649 = vmatprep.subr.mxu0 0.0
      %1650 = vmatpush2.msra.mxu0 0.0
      %1651 = vmatprep.subr.mxu0 0.0
      %1652 = vmatpush2.msra.mxu0 0.0
      %1653 = vmatprep.subr.mxu0 0.0
      %1654 = vmatpush2.msra.mxu0 0.0
      %1655 = vmatprep.subr.mxu0 0.0
      %1656 = vmatpush2.msra.mxu0 0.0
      %1657 = vmatprep.subr.mxu0 0.0
      %1658 = vmatpush2.msra.mxu0 0.0
      %1659 = vmatprep.subr.mxu0 0.0
      %1660 = vmatpush2.msra.mxu0 0.0
      %1661 = vmatprep.subr.mxu0 0.0
      %1662 = vmatpush2.msra.mxu0 0.0
      %1663 = vmatprep.subr.mxu0 0.0
      %1664 = vmatpush2.msra.mxu0 0.0
      %1665 = vmatprep.mubr.f32.mxu0 0.0
      %1666 = vmatmul.mubr.f32.gmra.mxu0 %v1502
      %v1667 = vpop.f32.mrf.mxu0
      %v1668 = vadd.f32 %v619, %v1667
      %v1669 = vpop.f32.mrf.mxu0
      %1670 = vmatprep.mubr.f32.mxu0 0.0
      %1671 = vmatmul.mubr.f32.gmra.mxu0 %v1505
      %v1672 = vpop.f32.mrf.mxu0
      %v1673 = vadd.f32 %v625, %v1672
      %v1674 = vpop.f32.mrf.mxu0
      %1675 = vmatprep.mubr.f32.mxu0 0.0
      %1676 = vmatmul.mubr.f32.gmra.mxu0 %v1508
      %v1677 = vpop.f32.mrf.mxu0
      %v1678 = vadd.f32 %v631, %v1677
      %v1679 = vpop.f32.mrf.mxu0
      %1680 = vmatprep.mubr.f32.mxu0 0.0
      %1681 = vmatmul.mubr.f32.gmra.mxu0 %v1511
      %v1682 = vpop.f32.mrf.mxu0
      %v1683 = vadd.f32 %v637, %v1682
      %v1684 = vpop.f32.mrf.mxu0
      %1685 = vmatprep.mubr.f32.mxu0 0.0
      %1686 = vmatmul.mubr.f32.gmra.mxu0 %v1514
      %v1687 = vpop.f32.mrf.mxu0
      %v1688 = vadd.f32 %v643, %v1687
      %v1689 = vpop.f32.mrf.mxu0
      %1690 = vmatprep.mubr.f32.mxu0 0.0
      %1691 = vmatmul.mubr.f32.gmra.mxu0 %v1517
      %v1692 = vpop.f32.mrf.mxu0
      %v1693 = vadd.f32 %v649, %v1692
      %v1694 = vpop.f32.mrf.mxu0
      %1695 = vmatprep.mubr.f32.mxu0 0.0
      %1696 = vmatmul.mubr.f32.gmra.mxu0 %v1520
      %v1697 = vpop.f32.mrf.mxu0
      %v1698 = vadd.f32 %v655, %v1697
      %v1699 = vpop.f32.mrf.mxu0
      %1700 = vmatprep.mubr.f32.mxu0 0.0
      %1701 = vmatmul.mubr.f32.gmra.mxu0 %v1523
      %v1702 = vpop.f32.mrf.mxu0
      %v1703 = vadd.f32 %v661, %v1702
      %v1704 = vpop.f32.mrf.mxu0
      %1705 = vmatprep.mubr.f32.mxu0 0.0
      %1706 = vmatmul.mubr.f32.gmra.mxu0 %v1526
      %v1707 = vpop.f32.mrf.mxu0
      %v1708 = vadd.f32 %v667, %v1707
      %v1709 = vpop.f32.mrf.mxu0
      %1710 = vmatprep.mubr.f32.mxu0 0.0
      %1711 = vmatmul.mubr.f32.gmra.mxu0 %v1529
      %v1712 = vpop.f32.mrf.mxu0
      %v1713 = vadd.f32 %v673, %v1712
      %v1714 = vpop.f32.mrf.mxu0
      %1715 = vmatprep.mubr.f32.mxu0 0.0
      %1716 = vmatmul.mubr.f32.gmra.mxu0 %v1532
      %v1717 = vpop.f32.mrf.mxu0
      %v1718 = vadd.f32 %v679, %v1717
      %v1719 = vpop.f32.mrf.mxu0
      %1720 = vmatprep.mubr.f32.mxu0 0.0
      %1721 = vmatmul.mubr.f32.gmra.mxu0 %v1535
      %v1722 = vpop.f32.mrf.mxu0
      %v1723 = vadd.f32 %v685, %v1722
      %v1724 = vpop.f32.mrf.mxu0
      %1725 = vmatprep.mubr.f32.mxu0 0.0
      %1726 = vmatmul.mubr.f32.gmra.mxu0 %v1538
      %v1727 = vpop.f32.mrf.mxu0
      %v1728 = vadd.f32 %v691, %v1727
      %v1729 = vpop.f32.mrf.mxu0
      %1730 = vmatprep.mubr.f32.mxu0 0.0
      %1731 = vmatmul.mubr.f32.gmra.mxu0 %v1541
      %v1732 = vpop.f32.mrf.mxu0
      %v1733 = vadd.f32 %v697, %v1732
      %v1734 = vpop.f32.mrf.mxu0
      %1735 = vmatprep.mubr.f32.mxu0 0.0
      %1736 = vmatmul.mubr.f32.gmra.mxu0 %v1544
      %v1737 = vpop.f32.mrf.mxu0
      %v1738 = vadd.f32 %v703, %v1737
      %v1739 = vpop.f32.mrf.mxu0
      %1740 = vmatprep.mubr.f32.mxu0 0.0
      %1741 = vmatmul.mubr.f32.gmra.mxu0 %v1547
      %v1742 = vpop.f32.mrf.mxu0
      %v1743 = vadd.f32 %v709, %v1742
      %v1744 = vpop.f32.mrf.mxu0
      %1745 = vmatprep.mubr.f32.mxu0 0.0
      %1746 = vmatmul.mubr.f32.gmra.mxu0 %v1550
      %v1747 = vpop.f32.mrf.mxu0
      %v1748 = vadd.f32 %v715, %v1747
      %v1749 = vpop.f32.mrf.mxu0
      %1750 = vmatprep.mubr.f32.mxu0 0.0
      %1751 = vmatmul.mubr.f32.gmra.mxu0 %v1553
      %v1752 = vpop.f32.mrf.mxu0
      %v1753 = vadd.f32 %v721, %v1752
      %v1754 = vpop.f32.mrf.mxu0
      %1755 = vmatprep.mubr.f32.mxu0 0.0
      %1756 = vmatmul.mubr.f32.gmra.mxu0 %v1556
      %v1757 = vpop.f32.mrf.mxu0
      %v1758 = vadd.f32 %v727, %v1757
      %v1759 = vpop.f32.mrf.mxu0
      %1760 = vmatprep.mubr.f32.mxu0 0.0
      %1761 = vmatmul.mubr.f32.gmra.mxu0 %v1559
      %v1762 = vpop.f32.mrf.mxu0
      %v1763 = vadd.f32 %v733, %v1762
      %v1764 = vpop.f32.mrf.mxu0
      %1765 = vmatprep.mubr.f32.mxu0 0.0
      %1766 = vmatmul.mubr.f32.gmra.mxu0 %v1562
      %v1767 = vpop.f32.mrf.mxu0
      %v1768 = vadd.f32 %v739, %v1767
      %v1769 = vpop.f32.mrf.mxu0
      %1770 = vmatprep.mubr.f32.mxu0 0.0
      %1771 = vmatmul.mubr.f32.gmra.mxu0 %v1565
      %v1772 = vpop.f32.mrf.mxu0
      %v1773 = vadd.f32 %v745, %v1772
      %v1774 = vpop.f32.mrf.mxu0
      %1775 = vmatprep.mubr.f32.mxu0 0.0
      %1776 = vmatmul.mubr.f32.gmra.mxu0 %v1568
      %v1777 = vpop.f32.mrf.mxu0
      %v1778 = vadd.f32 %v751, %v1777
      %v1779 = vpop.f32.mrf.mxu0
      %1780 = vmatprep.mubr.f32.mxu0 0.0
      %1781 = vmatmul.mubr.f32.gmra.mxu0 %v1571
      %v1782 = vpop.f32.mrf.mxu0
      %v1783 = vadd.f32 %v757, %v1782
      %v1784 = vpop.f32.mrf.mxu0
      %1785 = vmatprep.mubr.f32.mxu0 0.0
      %1786 = vmatmul.mubr.f32.gmra.mxu0 %v1574
      %v1787 = vpop.f32.mrf.mxu0
      %v1788 = vadd.f32 %v763, %v1787
      %v1789 = vpop.f32.mrf.mxu0
      %1790 = vmatprep.mubr.f32.mxu0 0.0
      %1791 = vmatmul.mubr.f32.gmra.mxu0 %v1577
      %v1792 = vpop.f32.mrf.mxu0
      %v1793 = vadd.f32 %v769, %v1792
      %v1794 = vpop.f32.mrf.mxu0
      %1795 = vmatprep.mubr.f32.mxu0 0.0
      %1796 = vmatmul.mubr.f32.gmra.mxu0 %v1580
      %v1797 = vpop.f32.mrf.mxu0
      %v1798 = vadd.f32 %v775, %v1797
      %v1799 = vpop.f32.mrf.mxu0
      %1800 = vmatprep.mubr.f32.mxu0 0.0
      %1801 = vmatmul.mubr.f32.gmra.mxu0 %v1583
      %v1802 = vpop.f32.mrf.mxu0
      %v1803 = vadd.f32 %v781, %v1802
      %v1804 = vpop.f32.mrf.mxu0
      %1805 = vmatprep.mubr.f32.mxu0 0.0
      %1806 = vmatmul.mubr.f32.gmra.mxu0 %v1586
      %v1807 = vpop.f32.mrf.mxu0
      %v1808 = vadd.f32 %v787, %v1807
      %v1809 = vpop.f32.mrf.mxu0
      %1810 = vmatprep.mubr.f32.mxu0 0.0
      %1811 = vmatmul.mubr.f32.gmra.mxu0 %v1589
      %v1812 = vpop.f32.mrf.mxu0
      %v1813 = vadd.f32 %v793, %v1812
      %v1814 = vpop.f32.mrf.mxu0
      %1815 = vmatprep.mubr.f32.mxu0 0.0
      %1816 = vmatmul.mubr.f32.gmra.mxu0 %v1592
      %v1817 = vpop.f32.mrf.mxu0
      %v1818 = vadd.f32 %v799, %v1817
      %v1819 = vpop.f32.mrf.mxu0
      %1820 = vmatprep.mubr.f32.mxu0 0.0
      %1821 = vmatmul.mubr.f32.gmra.mxu0 %v1595
      %v1822 = vpop.f32.mrf.mxu0
      %v1823 = vadd.f32 %v805, %v1822
      %v1824 = vpop.f32.mrf.mxu0
      %1825 = vdwg.mxu0
      %v1826 = vld [vmem:[%s8] sm:$0x1]
      %v1828 = vlaneseq
      %v1829 = vshrl.u32 %v1828, 7
      %v1830 = vsub.s32 0, %v1829
      %v1831 = vrot.slane %v1826, %v1830
      %v1833 = vadd.f32 %v1668, %v1831
      %v1834 = vadd.f32 %v1673, %v1831
      %v1835 = vadd.f32 %v1678, %v1831
      %v1836 = vadd.f32 %v1683, %v1831
      %v1837 = vadd.f32 %v1688, %v1831
      %v1838 = vadd.f32 %v1693, %v1831
      %v1839 = vadd.f32 %v1698, %v1831
      %v1840 = vadd.f32 %v1703, %v1831
      %v1841 = vadd.f32 %v1708, %v1831
      %v1842 = vadd.f32 %v1713, %v1831
      %v1843 = vadd.f32 %v1718, %v1831
      %v1844 = vadd.f32 %v1723, %v1831
      %v1845 = vadd.f32 %v1728, %v1831
      %v1846 = vadd.f32 %v1733, %v1831
      %v1847 = vadd.f32 %v1738, %v1831
      %v1848 = vadd.f32 %v1743, %v1831
      %v1849 = vadd.f32 %v1748, %v1831
      %v1850 = vadd.f32 %v1753, %v1831
      %v1851 = vadd.f32 %v1758, %v1831
      %v1852 = vadd.f32 %v1763, %v1831
      %v1853 = vadd.f32 %v1768, %v1831
      %v1854 = vadd.f32 %v1773, %v1831
      %v1855 = vadd.f32 %v1778, %v1831
      %v1856 = vadd.f32 %v1783, %v1831
      %v1857 = vadd.f32 %v1788, %v1831
      %v1858 = vadd.f32 %v1793, %v1831
      %v1859 = vadd.f32 %v1798, %v1831
      %v1860 = vadd.f32 %v1803, %v1831
      %v1861 = vadd.f32 %v1808, %v1831
      %v1862 = vadd.f32 %v1813, %v1831
      %v1863 = vadd.f32 %v1818, %v1831
      %v1864 = vadd.f32 %v1823, %v1831
      %v1865 = vmax.f32 %v1833, 0.0
      %v1866 = vmax.f32 %v1834, 0.0
      %v1867 = vmax.f32 %v1835, 0.0
      %v1868 = vmax.f32 %v1836, 0.0
      %v1869 = vmax.f32 %v1837, 0.0
      %v1870 = vmax.f32 %v1838, 0.0
      %v1871 = vmax.f32 %v1839, 0.0
      %v1872 = vmax.f32 %v1840, 0.0
      %v1873 = vmax.f32 %v1841, 0.0
      %v1874 = vmax.f32 %v1842, 0.0
      %v1875 = vmax.f32 %v1843, 0.0
      %v1876 = vmax.f32 %v1844, 0.0
      %v1877 = vmax.f32 %v1845, 0.0
      %v1878 = vmax.f32 %v1846, 0.0
      %v1879 = vmax.f32 %v1847, 0.0
      %v1880 = vmax.f32 %v1848, 0.0
      %v1881 = vmax.f32 %v1849, 0.0
      %v1882 = vmax.f32 %v1850, 0.0
      %v1883 = vmax.f32 %v1851, 0.0
      %v1884 = vmax.f32 %v1852, 0.0
      %v1885 = vmax.f32 %v1853, 0.0
      %v1886 = vmax.f32 %v1854, 0.0
      %v1887 = vmax.f32 %v1855, 0.0
      %v1888 = vmax.f32 %v1856, 0.0
      %v1889 = vmax.f32 %v1857, 0.0
      %v1890 = vmax.f32 %v1858, 0.0
      %v1891 = vmax.f32 %v1859, 0.0
      %v1892 = vmax.f32 %v1860, 0.0
      %v1893 = vmax.f32 %v1861, 0.0
      %v1894 = vmax.f32 %v1862, 0.0
      %v1895 = vmax.f32 %v1863, 0.0
      %v1896 = vmax.f32 %v1864, 0.0
      %v1897 = vld [vmem:[%s9] sm:$0x1]
      %v1899 = vlaneseq
      %v1900 = vshrl.u32 %v1899, 7
      %v1901 = vsub.s32 0, %v1900
      %v1902 = vrot.slane %v1897, %v1901
      %v1904 = vmul.f32 %v1865, %v1902
      %v1905 = vmul.f32 %v1866, %v1902
      %v1906 = vmul.f32 %v1867, %v1902
      %v1907 = vmul.f32 %v1868, %v1902
      %v1908 = vmul.f32 %v1869, %v1902
      %v1909 = vmul.f32 %v1870, %v1902
      %v1910 = vmul.f32 %v1871, %v1902
      %v1911 = vmul.f32 %v1872, %v1902
      %v1912 = vmul.f32 %v1873, %v1902
      %v1913 = vmul.f32 %v1874, %v1902
      %v1914 = vmul.f32 %v1875, %v1902
      %v1915 = vmul.f32 %v1876, %v1902
      %v1916 = vmul.f32 %v1877, %v1902
      %v1917 = vmul.f32 %v1878, %v1902
      %v1918 = vmul.f32 %v1879, %v1902
      %v1919 = vmul.f32 %v1880, %v1902
      %v1920 = vmul.f32 %v1881, %v1902
      %v1921 = vmul.f32 %v1882, %v1902
      %v1922 = vmul.f32 %v1883, %v1902
      %v1923 = vmul.f32 %v1884, %v1902
      %v1924 = vmul.f32 %v1885, %v1902
      %v1925 = vmul.f32 %v1886, %v1902
      %v1926 = vmul.f32 %v1887, %v1902
      %v1927 = vmul.f32 %v1888, %v1902
      %v1928 = vmul.f32 %v1889, %v1902
      %v1929 = vmul.f32 %v1890, %v1902
      %v1930 = vmul.f32 %v1891, %v1902
      %v1931 = vmul.f32 %v1892, %v1902
      %v1932 = vmul.f32 %v1893, %v1902
      %v1933 = vmul.f32 %v1894, %v1902
      %v1934 = vmul.f32 %v1895, %v1902
      %v1935 = vmul.f32 %v1896, %v1902
      %1936 = vadd.xlane.f32.xlu0 %v1904
      %v1937 = vpop.xlane.xlu0 %1936
      %1938 = vadd.xlane.f32.xlu0 %v1905
      %v1939 = vpop.xlane.xlu0 %1938
      %1940 = vadd.xlane.f32.xlu0 %v1906
      %v1941 = vpop.xlane.xlu0 %1940
      %1942 = vadd.xlane.f32.xlu0 %v1907
      %v1943 = vpop.xlane.xlu0 %1942
      %1944 = vadd.xlane.f32.xlu0 %v1908
      %v1945 = vpop.xlane.xlu0 %1944
      %1946 = vadd.xlane.f32.xlu0 %v1909
      %v1947 = vpop.xlane.xlu0 %1946
      %1948 = vadd.xlane.f32.xlu0 %v1910
      %v1949 = vpop.xlane.xlu0 %1948
      %1950 = vadd.xlane.f32.xlu0 %v1911
      %v1951 = vpop.xlane.xlu0 %1950
      %1952 = vadd.xlane.f32.xlu0 %v1912
      %v1953 = vpop.xlane.xlu0 %1952
      %1954 = vadd.xlane.f32.xlu0 %v1913
      %v1955 = vpop.xlane.xlu0 %1954
      %1956 = vadd.xlane.f32.xlu0 %v1914
      %v1957 = vpop.xlane.xlu0 %1956
      %1958 = vadd.xlane.f32.xlu0 %v1915
      %v1959 = vpop.xlane.xlu0 %1958
      %1960 = vadd.xlane.f32.xlu0 %v1916
      %v1961 = vpop.xlane.xlu0 %1960
      %1962 = vadd.xlane.f32.xlu0 %v1917
      %v1963 = vpop.xlane.xlu0 %1962
      %1964 = vadd.xlane.f32.xlu0 %v1918
      %v1965 = vpop.xlane.xlu0 %1964
      %1966 = vadd.xlane.f32.xlu0 %v1919
      %v1967 = vpop.xlane.xlu0 %1966
      %1968 = vadd.xlane.f32.xlu0 %v1920
      %v1969 = vpop.xlane.xlu0 %1968
      %1970 = vadd.xlane.f32.xlu0 %v1921
      %v1971 = vpop.xlane.xlu0 %1970
      %1972 = vadd.xlane.f32.xlu0 %v1922
      %v1973 = vpop.xlane.xlu0 %1972
      %1974 = vadd.xlane.f32.xlu0 %v1923
      %v1975 = vpop.xlane.xlu0 %1974
      %1976 = vadd.xlane.f32.xlu0 %v1924
      %v1977 = vpop.xlane.xlu0 %1976
      %1978 = vadd.xlane.f32.xlu0 %v1925
      %v1979 = vpop.xlane.xlu0 %1978
      %1980 = vadd.xlane.f32.xlu0 %v1926
      %v1981 = vpop.xlane.xlu0 %1980
      %1982 = vadd.xlane.f32.xlu0 %v1927
      %v1983 = vpop.xlane.xlu0 %1982
      %1984 = vadd.xlane.f32.xlu0 %v1928
      %v1985 = vpop.xlane.xlu0 %1984
      %1986 = vadd.xlane.f32.xlu0 %v1929
      %v1987 = vpop.xlane.xlu0 %1986
      %1988 = vadd.xlane.f32.xlu0 %v1930
      %v1989 = vpop.xlane.xlu0 %1988
      %1990 = vadd.xlane.f32.xlu0 %v1931
      %v1991 = vpop.xlane.xlu0 %1990
      %1992 = vadd.xlane.f32.xlu0 %v1932
      %v1993 = vpop.xlane.xlu0 %1992
      %1994 = vadd.xlane.f32.xlu0 %v1933
      %v1995 = vpop.xlane.xlu0 %1994
      %1996 = vadd.xlane.f32.xlu0 %v1934
      %v1997 = vpop.xlane.xlu0 %1996
      %1998 = vadd.xlane.f32.xlu0 %v1935
      %v1999 = vpop.xlane.xlu0 %1998
      %v2000 = vld [vmem:[#allocation2] sm:$0x1]
      %v2002 = vlaneseq
      %v2003 = vshrl.u32 %v2002, 7
      %v2004 = vsub.s32 0, %v2003
      %v2005 = vrot.slane %v2000, %v2004
      %v2007 = vadd.f32 %v1937, %v2005
      %v2008 = vadd.f32 %v1939, %v2005
      %v2009 = vadd.f32 %v1941, %v2005
      %v2010 = vadd.f32 %v1943, %v2005
      %v2011 = vadd.f32 %v1945, %v2005
      %v2012 = vadd.f32 %v1947, %v2005
      %v2013 = vadd.f32 %v1949, %v2005
      %v2014 = vadd.f32 %v1951, %v2005
      %v2015 = vadd.f32 %v1953, %v2005
      %v2016 = vadd.f32 %v1955, %v2005
      %v2017 = vadd.f32 %v1957, %v2005
      %v2018 = vadd.f32 %v1959, %v2005
      %v2019 = vadd.f32 %v1961, %v2005
      %v2020 = vadd.f32 %v1963, %v2005
      %v2021 = vadd.f32 %v1965, %v2005
      %v2022 = vadd.f32 %v1967, %v2005
      %v2023 = vadd.f32 %v1969, %v2005
      %v2024 = vadd.f32 %v1971, %v2005
      %v2025 = vadd.f32 %v1973, %v2005
      %v2026 = vadd.f32 %v1975, %v2005
      %v2027 = vadd.f32 %v1977, %v2005
      %v2028 = vadd.f32 %v1979, %v2005
      %v2029 = vadd.f32 %v1981, %v2005
      %v2030 = vadd.f32 %v1983, %v2005
      %v2031 = vadd.f32 %v1985, %v2005
      %v2032 = vadd.f32 %v1987, %v2005
      %v2033 = vadd.f32 %v1989, %v2005
      %v2034 = vadd.f32 %v1991, %v2005
      %v2035 = vadd.f32 %v1993, %v2005
      %v2036 = vadd.f32 %v1995, %v2005
      %v2037 = vadd.f32 %v1997, %v2005
      %v2038 = vadd.f32 %v1999, %v2005
      %v2039 = vtanh.pop %v2007
      %v2040 = vtanh.pop %v2008
      %v2041 = vtanh.pop %v2009
      %v2042 = vtanh.pop %v2010
      %v2043 = vtanh.pop %v2011
      %v2044 = vtanh.pop %v2012
      %v2045 = vtanh.pop %v2013
      %v2046 = vtanh.pop %v2014
      %v2047 = vtanh.pop %v2015
      %v2048 = vtanh.pop %v2016
      %v2049 = vtanh.pop %v2017
      %v2050 = vtanh.pop %v2018
      %v2051 = vtanh.pop %v2019
      %v2052 = vtanh.pop %v2020
      %v2053 = vtanh.pop %v2021
      %v2054 = vtanh.pop %v2022
      %v2055 = vtanh.pop %v2023
      %v2056 = vtanh.pop %v2024
      %v2057 = vtanh.pop %v2025
      %v2058 = vtanh.pop %v2026
      %v2059 = vtanh.pop %v2027
      %v2060 = vtanh.pop %v2028
      %v2061 = vtanh.pop %v2029
      %v2062 = vtanh.pop %v2030
      %v2063 = vtanh.pop %v2031
      %v2064 = vtanh.pop %v2032
      %v2065 = vtanh.pop %v2033
      %v2066 = vtanh.pop %v2034
      %v2067 = vtanh.pop %v2035
      %v2068 = vtanh.pop %v2036
      %v2069 = vtanh.pop %v2037
      %v2070 = vtanh.pop %v2038
      %vm2071 = vcmask 7168
      %2072 = vst.msk [vmem:[%s390] sm:$0xff] %vm2071, %v2039
      %2073 = vst.msk [vmem:[%s390 + $0x8] sm:$0xff] %vm2071, %v2040
      %2074 = vst.msk [vmem:[%s390 + $0x10] sm:$0xff] %vm2071, %v2041
      %2075 = vst.msk [vmem:[%s390 + $0x18] sm:$0xff] %vm2071, %v2042
      %2076 = vst.msk [vmem:[%s390 + $0x20] sm:$0xff] %vm2071, %v2043
      %2077 = vst.msk [vmem:[%s390 + $0x28] sm:$0xff] %vm2071, %v2044
      %2078 = vst.msk [vmem:[%s390 + $0x30] sm:$0xff] %vm2071, %v2045
      %2079 = vst.msk [vmem:[%s390 + $0x38] sm:$0xff] %vm2071, %v2046
      %2080 = vst.msk [vmem:[%s390 + $0x40] sm:$0xff] %vm2071, %v2047
      %2081 = vst.msk [vmem:[%s390 + $0x48] sm:$0xff] %vm2071, %v2048
      %2082 = vst.msk [vmem:[%s390 + $0x50] sm:$0xff] %vm2071, %v2049
      %2083 = vst.msk [vmem:[%s390 + $0x58] sm:$0xff] %vm2071, %v2050
      %2084 = vst.msk [vmem:[%s390 + $0x60] sm:$0xff] %vm2071, %v2051
      %2085 = vst.msk [vmem:[%s390 + $0x68] sm:$0xff] %vm2071, %v2052
      %2086 = vst.msk [vmem:[%s390 + $0x70] sm:$0xff] %vm2071, %v2053
      %2087 = vst.msk [vmem:[%s390 + $0x78] sm:$0xff] %vm2071, %v2054
      %2088 = vst.msk [vmem:[%s390 + $0x80] sm:$0xff] %vm2071, %v2055
      %2089 = vst.msk [vmem:[%s390 + $0x88] sm:$0xff] %vm2071, %v2056
      %2090 = vst.msk [vmem:[%s390 + $0x90] sm:$0xff] %vm2071, %v2057
      %2091 = vst.msk [vmem:[%s390 + $0x98] sm:$0xff] %vm2071, %v2058
      %2092 = vst.msk [vmem:[%s390 + $0xa0] sm:$0xff] %vm2071, %v2059
      %2093 = vst.msk [vmem:[%s390 + $0xa8] sm:$0xff] %vm2071, %v2060
      %2094 = vst.msk [vmem:[%s390 + $0xb0] sm:$0xff] %vm2071, %v2061
      %2095 = vst.msk [vmem:[%s390 + $0xb8] sm:$0xff] %vm2071, %v2062
      %2096 = vst.msk [vmem:[%s390 + $0xc0] sm:$0xff] %vm2071, %v2063
      %2097 = vst.msk [vmem:[%s390 + $0xc8] sm:$0xff] %vm2071, %v2064
      %2098 = vst.msk [vmem:[%s390 + $0xd0] sm:$0xff] %vm2071, %v2065
      %2099 = vst.msk [vmem:[%s390 + $0xd8] sm:$0xff] %vm2071, %v2066
      %2100 = vst.msk [vmem:[%s390 + $0xe0] sm:$0xff] %vm2071, %v2067
      %2101 = vst.msk [vmem:[%s390 + $0xe8] sm:$0xff] %vm2071, %v2068
      %2102 = vst.msk [vmem:[%s390 + $0xf0] sm:$0xff] %vm2071, %v2069
      %2103 = vst.msk [vmem:[%s390 + $0xf8] sm:$0xff] %vm2071, %v2070
      %s2104 = smul.u32 32, %s24
      %p2105 = scmp.lt.s32.totalorder %s2104, 63
      %s2106 = scalar_select %p2105, %s2104, 63
      %s2107 = smul.addr %s2106, 8
      %s2108 = scalar_lea.vmem %s11, %s2107
      // Predicated region
      $region65: #{tpu_custom_call.1} parent=63 // pred_check
        %p2109 = pneg %p278
      $region66: #{tpu_custom_call.1} parent=63 // pred_check_branch
        %2111 = sbr.rel (%p2109) target = $region68
      $region67: #{tpu_custom_call.1} parent=63 // pred_region
        %s2112 = smul.u32 32, %s24
      $region68: #{tpu_custom_call.1} parent=63 // pred_fallthru
        _
    $region64: #{tpu_custom_call.1} parent=5 // pred_fallthru
      _
    %p2113 = scmp.le.s32.totalorder 2, %s19
    // Predicated region
    $region69: #{tpu_custom_call.1} parent=5 // pred_check
      %p2114 = pneg %p2113
    $region70: #{tpu_custom_call.1} parent=5 // pred_check_branch
      %2116 = sbr.rel (%p2114) target = $region72
    $region71: #{tpu_custom_call.1} parent=5 // pred_region
      %s2117 = ssub.s32 %s19, 2
      // Predicated region
      $region73: #{tpu_custom_call.1} parent=71 // pred_check
        %p2118 = pneg %p284
      $region74: #{tpu_custom_call.1} parent=71 // pred_check_branch
        %2120 = sbr.rel (%p2118) target = $region76
      $region75: #{tpu_custom_call.1} parent=71 // pred_region
        %s2121 = smul.u32 32, %s25
        %p2122 = scmp.lt.s32.totalorder %s2121, 63
        %s2123 = scalar_select %p2122, %s2121, 63
        %s2124 = smul.addr %s2123, 8
        %s2125 = scalar_lea.vmem %s11, %s2124
      $region76: #{tpu_custom_call.1} parent=71 // pred_fallthru
        _
    $region72: #{tpu_custom_call.1} parent=5 // pred_fallthru
      _
  $region6: #{tpu_custom_call.1} parent=0 // loop_footer
    %s23 = sadd.s32 1, %s19
  $region7: #{tpu_custom_call.1} parent=0 // loop_footer_branch
    %18 = sbr.rel target = $region3
  $region8: #{tpu_custom_call.1} parent=0 // loop_exit
    _

</llo_original>
